<compile_context>
chip_gen: v7x
topology: tpu7x:2x2x1
jax: 0.10.0
libtpu: 0.0.40
codegen_flags: <defaults>
</compile_context>

<pallas_src>
import functools

import jax
import jax.numpy as jnp
from jax.experimental import pallas as pl
from jax.experimental.pallas import tpu as pltpu

K_IN = 28 * 28          # 784 (ragged K fed straight to the MXU; no zero padding)
H = 512
N_OUT = 10
N_PAD = 128             # lane-aligned logits width -> dense unmasked vst


def _round_up(x, m):
    return (x + m - 1) // m * m


def _cdiv(a, b):
    return -(-a // b)


def _choose_tm(batch, tm_cap):
    """Batch tile: multiple of 8, <= tm_cap, >= 2 grid steps when possible (v7x dual-TC),
    minimal batch padding."""
    b8 = _round_up(batch, 8)
    if b8 <= 8:
        return 8
    n_steps = max(2, _cdiv(b8, tm_cap))
    tm = _round_up(_cdiv(batch, n_steps), 8)
    return min(tm, tm_cap)


def mlp_kernel(x_ref, w1_ref, b1_ref, w2_ref, b2_ref, w3_ref, b3_ref, o_ref):
    # Layer 1: bf16 [TM,784] @ bf16 [784,512] -> f32 acc, bias+ReLU in f32.
    h1 = jnp.dot(x_ref[...], w1_ref[...], preferred_element_type=jnp.float32)
    h1 = jnp.maximum(h1 + b1_ref[...], 0.0)
    # Layer 2: cast activation to bf16 only at the MXU boundary.
    h2 = jnp.dot(h1.astype(jnp.bfloat16), w2_ref[...],
                 preferred_element_type=jnp.float32)
    h2 = jnp.maximum(h2 + b2_ref[...], 0.0)
    # Layer 3 (logits, padded to 128 lanes -> dense unmasked store).
    logits = jnp.dot(h2.astype(jnp.bfloat16), w3_ref[...],
                     preferred_element_type=jnp.float32)
    o_ref[...] = (logits + b3_ref[...]).astype(o_ref.dtype)


def prepare_params(params):
    """One-time prep: bf16 weights, f32 biases, pad logits width 10 -> 128."""
    w1, b1, w2, b2, w3, b3 = params
    w1p = w1.astype(jnp.bfloat16)                                   # (784, 512)
    w2p = w2.astype(jnp.bfloat16)                                   # (512, 512)
    w3p = jnp.zeros((H, N_PAD), jnp.float32).at[:, :N_OUT].set(w3).astype(jnp.bfloat16)
    b3p = jnp.zeros((1, N_PAD), jnp.float32).at[:, :N_OUT].set(b3)
    return (w1p, b1.astype(jnp.float32), w2p, b2.astype(jnp.float32), w3p, b3p)


@functools.partial(jax.jit, static_argnames=("tm",))
def neural_network_forward(x_nchw, prepped_params, tm=256):
    """x_nchw: [B, 1, 28, 28] float32. Returns logits [B, 10] float32."""
    w1p, b1, w2p, b2, w3p, b3p = prepped_params
    B = x_nchw.shape[0]

    tm_cap = max(tm, 512) if B >= 2048 else tm
    TM = _choose_tm(B, tm_cap)
    B_pad = _round_up(B, TM)

    # nn.Flatten + bf16 cast BEFORE padding; skip padding when not needed.
    x_flat = x_nchw.reshape(B, K_IN).astype(jnp.bfloat16)
    x_in = x_flat if B_pad == B else jnp.pad(x_flat, ((0, B_pad - B), (0, 0)))

    grid = (B_pad // TM,)
    const = lambda i: (0, 0)       # weights/biases resident across the batch grid
    resident = pl.Buffered(1)      # single-buffered: constant block index, no dead 2nd buffer

    flops = 2 * B_pad * (K_IN * H + H * H + H * N_PAD)
    bytes_accessed = (x_in.size * 2 + w1p.size * 2 + w2p.size * 2 + w3p.size * 2
                      + b1.size * 4 + b2.size * 4 + b3p.size * 4
                      + B_pad * N_PAD * 4)

    out = pl.pallas_call(
        mlp_kernel,
        out_shape=jax.ShapeDtypeStruct((B_pad, N_PAD), jnp.float32),
        grid_spec=pltpu.PrefetchScalarGridSpec(
            num_scalar_prefetch=0,
            grid=grid,
            in_specs=[
                pl.BlockSpec((TM, K_IN), lambda i: (i, 0)),                # x tile (pipelined)
                pl.BlockSpec((K_IN, H), const, pipeline_mode=resident),    # w1 (resident)
                pl.BlockSpec((1, H), const, pipeline_mode=resident),       # b1
                pl.BlockSpec((H, H), const, pipeline_mode=resident),       # w2
                pl.BlockSpec((1, H), const, pipeline_mode=resident),       # b2
                pl.BlockSpec((H, N_PAD), const, pipeline_mode=resident),   # w3 (padded)
                pl.BlockSpec((1, N_PAD), const, pipeline_mode=resident),   # b3 (padded)
            ],
            out_specs=pl.BlockSpec((TM, N_PAD), lambda i: (i, 0)),
        ),
        compiler_params=pltpu.CompilerParams(
            dimension_semantics=("parallel",),
        ),
        cost_estimate=pl.CostEstimate(
            flops=flops, transcendentals=0, bytes_accessed=bytes_accessed),
    )(x_in, w1p, b1, w2p, b2, w3p, b3p)

    # Strip batch / lane padding.
    return out[:B, :N_OUT]


def init_params(key):
    """Deterministic init matching nn.Linear shapes (stored as [in, out])."""
    k1, k2, k3, k4, k5, k6 = jax.random.split(key, 6)

    def uniform_linear(kw, kb, fan_in, fan_out):
        # PyTorch default: U(-1/sqrt(fan_in), 1/sqrt(fan_in))
        bound = 1.0 / jnp.sqrt(jnp.float32(fan_in))
        w = jax.random.uniform(kw, (fan_in, fan_out), jnp.float32, -bound, bound)
        b = jax.random.uniform(kb, (1, fan_out), jnp.float32, -bound, bound)
        return w, b

    w1, b1 = uniform_linear(k1, k2, K_IN, H)
    w2, b2 = uniform_linear(k3, k4, H, H)
    w3, b3 = uniform_linear(k5, k6, H, N_OUT)
    return (w1, b1, w2, b2, w3, b3)


def reference_forward_bf16(x_nchw, params):
    """Pure-JAX reference using the same bf16-in / f32-acc numerics as the kernel."""
    w1, b1, w2, b2, w3, b3 = params
    x = x_nchw.reshape(x_nchw.shape[0], -1).astype(jnp.bfloat16)
    h = jnp.dot(x, w1.astype(jnp.bfloat16), preferred_element_type=jnp.float32) + b1
    h = jnp.maximum(h, 0.0)
    h = jnp.dot(h.astype(jnp.bfloat16), w2.astype(jnp.bfloat16),
                preferred_element_type=jnp.float32) + b2
    h = jnp.maximum(h, 0.0)
    return jnp.dot(h.astype(jnp.bfloat16), w3.astype(jnp.bfloat16),
                   preferred_element_type=jnp.float32) + b3


if __name__ == "__main__":
    key = jax.random.PRNGKey(0)
    kx, kp = jax.random.split(key)

    B = 8
    x = jax.random.normal(kx, (B, 1, 28, 28), dtype=jnp.float32)
    params = init_params(kp)
    prepped = prepare_params(params)

    logits = neural_network_forward(x, prepped)
    logits = jax.block_until_ready(logits)

    ref = reference_forward_bf16(x, params)
    assert logits.shape == (B, N_OUT)
    assert jnp.allclose(logits, ref, atol=2e-2, rtol=2e-2), (
        float(jnp.max(jnp.abs(logits - ref))))

    print("KERNEL_OK")
</pallas_src>

<mosaic_0001>
module attributes {stable_mosaic.version = 11 : i64} {
  func.func @mlp_kernel(%arg0: i32, %arg1: memref<8x784xbf16, #tpu.memory_space<vmem>>, %arg2: memref<784x512xbf16, #tpu.memory_space<vmem>>, %arg3: memref<1x512xf32, #tpu.memory_space<vmem>>, %arg4: memref<512x512xbf16, #tpu.memory_space<vmem>>, %arg5: memref<1x512xf32, #tpu.memory_space<vmem>>, %arg6: memref<512x128xbf16, #tpu.memory_space<vmem>>, %arg7: memref<1x128xf32, #tpu.memory_space<vmem>>, %arg8: memref<8x128xf32, #tpu.memory_space<vmem>>) attributes {dimension_semantics = [#tpu.dimension_semantics<parallel>], iteration_bounds = array<i64: 1>, scalar_prefetch = 0 : i64, scratch_operands = 0 : i64, tpu.core_type = #tpu.core_type<tc>, window_params = [{transform_indices = @transform_0, window_bounds = array<i64: 8, 784>}, {pipeline_mode = #tpu.pipeline_mode<synchronous>, transform_indices = @transform_1, window_bounds = array<i64: 784, 512>}, {pipeline_mode = #tpu.pipeline_mode<synchronous>, transform_indices = @transform_2, window_bounds = array<i64: 1, 512>}, {pipeline_mode = #tpu.pipeline_mode<synchronous>, transform_indices = @transform_3, window_bounds = array<i64: 512, 512>}, {pipeline_mode = #tpu.pipeline_mode<synchronous>, transform_indices = @transform_4, window_bounds = array<i64: 1, 512>}, {pipeline_mode = #tpu.pipeline_mode<synchronous>, transform_indices = @transform_5, window_bounds = array<i64: 512, 128>}, {pipeline_mode = #tpu.pipeline_mode<synchronous>, transform_indices = @transform_6, window_bounds = array<i64: 1, 128>}, {transform_indices = @transform_7, window_bounds = array<i64: 8, 128>}]} {
    %c0 = arith.constant 0 : index
    %c0_0 = arith.constant 0 : index
    %0 = vector.load %arg1[%c0, %c0_0] : memref<8x784xbf16, #tpu.memory_space<vmem>>, vector<8x784xbf16>
    %c0_1 = arith.constant 0 : index
    %c0_2 = arith.constant 0 : index
    %1 = vector.load %arg2[%c0_1, %c0_2] : memref<784x512xbf16, #tpu.memory_space<vmem>>, vector<784x512xbf16>
    %cst = arith.constant dense<0.000000e+00> : vector<8x512xf32>
    %2 = tpu.matmul %0, %1, %cst {dimension_numbers = #tpu.dot_dimension_numbers<[1], [0], [0], [1], [0, 0, 1, 1], [], []>} : vector<8x784xbf16>, vector<784x512xbf16>, vector<8x512xf32> -> vector<8x512xf32>
    %c0_3 = arith.constant 0 : index
    %c0_4 = arith.constant 0 : index
    %3 = vector.load %arg3[%c0_3, %c0_4] : memref<1x512xf32, #tpu.memory_space<vmem>>, vector<1x512xf32>
    %4 = vector.broadcast %3 : vector<1x512xf32> to vector<8x512xf32>
    %5 = arith.addf %2, %4 : vector<8x512xf32>
    %cst_5 = arith.constant 0.000000e+00 : f32
    %6 = vector.broadcast %cst_5 : f32 to vector<8x512xf32>
    %7 = arith.maximumf %5, %6 : vector<8x512xf32>
    %8 = arith.truncf %7 : vector<8x512xf32> to vector<8x512xbf16>
    %c0_6 = arith.constant 0 : index
    %c0_7 = arith.constant 0 : index
    %9 = vector.load %arg4[%c0_6, %c0_7] : memref<512x512xbf16, #tpu.memory_space<vmem>>, vector<512x512xbf16>
    %cst_8 = arith.constant dense<0.000000e+00> : vector<8x512xf32>
    %10 = tpu.matmul %8, %9, %cst_8 {dimension_numbers = #tpu.dot_dimension_numbers<[1], [0], [0], [1], [0, 0, 1, 1], [], []>} : vector<8x512xbf16>, vector<512x512xbf16>, vector<8x512xf32> -> vector<8x512xf32>
    %c0_9 = arith.constant 0 : index
    %c0_10 = arith.constant 0 : index
    %11 = vector.load %arg5[%c0_9, %c0_10] : memref<1x512xf32, #tpu.memory_space<vmem>>, vector<1x512xf32>
    %12 = vector.broadcast %11 : vector<1x512xf32> to vector<8x512xf32>
    %13 = arith.addf %10, %12 : vector<8x512xf32>
    %cst_11 = arith.constant 0.000000e+00 : f32
    %14 = vector.broadcast %cst_11 : f32 to vector<8x512xf32>
    %15 = arith.maximumf %13, %14 : vector<8x512xf32>
    %16 = arith.truncf %15 : vector<8x512xf32> to vector<8x512xbf16>
    %c0_12 = arith.constant 0 : index
    %c0_13 = arith.constant 0 : index
    %17 = vector.load %arg6[%c0_12, %c0_13] : memref<512x128xbf16, #tpu.memory_space<vmem>>, vector<512x128xbf16>
    %cst_14 = arith.constant dense<0.000000e+00> : vector<8x128xf32>
    %18 = tpu.matmul %16, %17, %cst_14 {dimension_numbers = #tpu.dot_dimension_numbers<[1], [0], [0], [1], [0, 0, 1, 1], [], []>} : vector<8x512xbf16>, vector<512x128xbf16>, vector<8x128xf32> -> vector<8x128xf32>
    %c0_15 = arith.constant 0 : index
    %c0_16 = arith.constant 0 : index
    %19 = vector.load %arg7[%c0_15, %c0_16] : memref<1x128xf32, #tpu.memory_space<vmem>>, vector<1x128xf32>
    %20 = vector.broadcast %19 : vector<1x128xf32> to vector<8x128xf32>
    %21 = arith.addf %18, %20 : vector<8x128xf32>
    %c0_17 = arith.constant 0 : index
    %c0_18 = arith.constant 0 : index
    %22 = vector.load %arg8[%c0_17, %c0_18] : memref<8x128xf32, #tpu.memory_space<vmem>>, vector<8x128xf32>
    tpu.vector_store %arg8[%c0_17, %c0_18], %21 {strides = array<i32>} : memref<8x128xf32, #tpu.memory_space<vmem>>, vector<8x128xf32>,
    return
  }
  func.func @transform_0(%arg0: i32) -> (i32, i32) {
    %c0_i32 = arith.constant 0 : i32
    %c0_i32_0 = arith.constant 0 : i32
    return %arg0, %c0_i32 : i32, i32
  }
  func.func @transform_1(%arg0: i32) -> (i32, i32) {
    %c0_i32 = arith.constant 0 : i32
    %c0_i32_0 = arith.constant 0 : i32
    %c0_i32_1 = arith.constant 0 : i32
    return %c0_i32, %c0_i32_0 : i32, i32
  }
  func.func @transform_2(%arg0: i32) -> (i32, i32) {
    %c0_i32 = arith.constant 0 : i32
    %c0_i32_0 = arith.constant 0 : i32
    %c0_i32_1 = arith.constant 0 : i32
    return %c0_i32, %c0_i32_0 : i32, i32
  }
  func.func @transform_3(%arg0: i32) -> (i32, i32) {
    %c0_i32 = arith.constant 0 : i32
    %c0_i32_0 = arith.constant 0 : i32
    %c0_i32_1 = arith.constant 0 : i32
    return %c0_i32, %c0_i32_0 : i32, i32
  }
  func.func @transform_4(%arg0: i32) -> (i32, i32) {
    %c0_i32 = arith.constant 0 : i32
    %c0_i32_0 = arith.constant 0 : i32
    %c0_i32_1 = arith.constant 0 : i32
    return %c0_i32, %c0_i32_0 : i32, i32
  }
  func.func @transform_5(%arg0: i32) -> (i32, i32) {
    %c0_i32 = arith.constant 0 : i32
    %c0_i32_0 = arith.constant 0 : i32
    %c0_i32_1 = arith.constant 0 : i32
    return %c0_i32, %c0_i32_0 : i32, i32
  }
  func.func @transform_6(%arg0: i32) -> (i32, i32) {
    %c0_i32 = arith.constant 0 : i32
    %c0_i32_0 = arith.constant 0 : i32
    %c0_i32_1 = arith.constant 0 : i32
    return %c0_i32, %c0_i32_0 : i32, i32
  }
  func.func @transform_7(%arg0: i32) -> (i32, i32) {
    %c0_i32 = arith.constant 0 : i32
    %c0_i32_0 = arith.constant 0 : i32
    return %arg0, %c0_i32 : i32, i32
  }
}

</mosaic_0001>

<llo_original>
// kernel: neural_network_forward.1
$region0: #{neural_network_forward.1}
  #allocation0 [shape = 'u32[]', space=smem, size = 0x4, offset = 0x4, fixed_abs, tag = 'smem constant byte address 0x4 - core index']
  #allocation1 [shape = 'u32[144,128]{1,0:T(1,128)}', space=vmem, size = 0x12000, scoped, tag = 'internal scratch']
  %s0 = inlined_call_operand.vmem [shape: bf16[8,784], index: 0, kind: input, shape index: {}]
  %s1 = inlined_call_operand.hbm [shape: bf16[784,512], index: 1, kind: input, shape index: {}]
  %s2 = inlined_call_operand.vmem [shape: f32[1,512], index: 2, kind: input, shape index: {}]
  %s3 = inlined_call_operand.hbm [shape: bf16[512,512], index: 3, kind: input, shape index: {}]
  %s4 = inlined_call_operand.vmem [shape: f32[1,512], index: 4, kind: input, shape index: {}]
  %s5 = inlined_call_operand.vmem [shape: bf16[512,128], index: 5, kind: input, shape index: {}]
  %s6 = inlined_call_operand.vmem [shape: f32[1,128], index: 6, kind: input, shape index: {}]
  %s7 = inlined_call_operand.hbm [shape: f32[8,128], index: 7, kind: output, shape index: {}]
  %s8 = sld [smem:[#allocation0]]
  $region46: #{neural_network_forward.1} parent=0
    _
  %s10 = ssub.s32 1, %s8
  %s11 = scalar_select 0, %s10, %s8
  $region1: #{neural_network_forward.1} parent=0
    #allocation2 [shape = 'u8[802816]{0}', space=vmem, size = 0xc4000, scoped, tag = 'input window, operand 1, single buffered']
    #allocation3 [shape = 's32[1]{0}', space=sflag, size = 0x4, scoped, tag = 'scoped memory for neural_network_forward.1']
    #allocation4 [shape = 's32[1]{0}', space=sflag, size = 0x4, scoped, tag = 'scoped memory for neural_network_forward.1']
    #allocation5 [shape = 'u8[524288]{0}', space=vmem, size = 0x80000, scoped, tag = 'input window, operand 3, single buffered']
    #allocation6 [shape = 's32[1]{0}', space=sflag, size = 0x4, scoped, tag = 'scoped memory for neural_network_forward.1']
    #allocation7 [shape = 'u8[4096]{0}', space=vmem, size = 0x1000, scoped, tag = 'output window, operand 0, single buffered']
    %12 = vsyncpa [#allocation3], 0
    %13 = vsyncpa [#allocation6], 0
    %14 = vsyncpa [#allocation4], 0
    // Predicated region
    $region2: #{neural_network_forward.1} parent=1 // pred_check
      _
    $region3: #{neural_network_forward.1} parent=1 // pred_check_branch
      %16 = sbr.rel (0) target = $region5
    $region4: #{neural_network_forward.1} parent=1 // pred_region
      _
    $region5: #{neural_network_forward.1} parent=1 // pred_fallthru
      _
    // Predicated region
    $region6: #{neural_network_forward.1} parent=1 // pred_check
      _
    $region7: #{neural_network_forward.1} parent=1 // pred_check_branch
      %18 = sbr.rel (0) target = $region9
    $region8: #{neural_network_forward.1} parent=1 // pred_region
      %s20 = ssub.s32 25088, 25088
      %21 = vsyncadd [#allocation3], %s20
      %s22 = sshll.u32 [#allocation2], 4
      %s23 = int_to_ptr.vmem [resolvable:$true] %s22
      %28 = dma.hbm_to_vmem [thread:$0]  %s1, 25088, %s23, [#allocation3], 256, 256, 16
    $region9: #{neural_network_forward.1} parent=1 // pred_fallthru
      _
    // Predicated region
    $region10: #{neural_network_forward.1} parent=1 // pred_check
      _
    $region11: #{neural_network_forward.1} parent=1 // pred_check_branch
      %30 = sbr.rel (0) target = $region13
    $region12: #{neural_network_forward.1} parent=1 // pred_region
      _
    $region13: #{neural_network_forward.1} parent=1 // pred_fallthru
      _
    // Predicated region
    $region14: #{neural_network_forward.1} parent=1 // pred_check
      _
    $region15: #{neural_network_forward.1} parent=1 // pred_check_branch
      %32 = sbr.rel (0) target = $region17
    $region16: #{neural_network_forward.1} parent=1 // pred_region
      %s34 = ssub.s32 16384, 16384
      %35 = vsyncadd [#allocation6], %s34
      %s36 = sshll.u32 [#allocation5], 4
      %s37 = int_to_ptr.vmem [resolvable:$true] %s36
      %42 = dma.hbm_to_vmem [thread:$0]  %s3, 16384, %s37, [#allocation6], 256, 256, 16
    $region17: #{neural_network_forward.1} parent=1 // pred_fallthru
      _
    // Predicated region
    $region18: #{neural_network_forward.1} parent=1 // pred_check
      _
    $region19: #{neural_network_forward.1} parent=1 // pred_check_branch
      %44 = sbr.rel (0) target = $region21
    $region20: #{neural_network_forward.1} parent=1 // pred_region
      _
    $region21: #{neural_network_forward.1} parent=1 // pred_fallthru
      _
    // Predicated region
    $region22: #{neural_network_forward.1} parent=1 // pred_check
      _
    $region23: #{neural_network_forward.1} parent=1 // pred_check_branch
      %46 = sbr.rel (0) target = $region25
    $region24: #{neural_network_forward.1} parent=1 // pred_region
      _
    $region25: #{neural_network_forward.1} parent=1 // pred_fallthru
      _
    // Predicated region
    $region26: #{neural_network_forward.1} parent=1 // pred_check
      _
    $region27: #{neural_network_forward.1} parent=1 // pred_check_branch
      %48 = sbr.rel (0) target = $region29
    $region28: #{neural_network_forward.1} parent=1 // pred_region
      _
    $region29: #{neural_network_forward.1} parent=1 // pred_fallthru
      _
    // Predicated region
    $region30: #{neural_network_forward.1} parent=1 // pred_check
      _
    $region31: #{neural_network_forward.1} parent=1 // pred_check_branch
      %50 = sbr.rel (0) target = $region33
    $region32: #{neural_network_forward.1} parent=1 // pred_region
      %51 = dma.done [#allocation3], 25088
    $region33: #{neural_network_forward.1} parent=1 // pred_fallthru
      _
    // Predicated region
    $region34: #{neural_network_forward.1} parent=1 // pred_check
      _
    $region35: #{neural_network_forward.1} parent=1 // pred_check_branch
      %53 = sbr.rel (0) target = $region37
    $region36: #{neural_network_forward.1} parent=1 // pred_region
      %54 = dma.done [#allocation6], 16384
    $region37: #{neural_network_forward.1} parent=1 // pred_fallthru
      _
    %v56 = vld [vmem:[%s0] sm:$0xff]
    %v57 = vld [vmem:[%s0 + $0x8] sm:$0xff]
    %v58 = vld [vmem:[%s0 + $0x10] sm:$0xff]
    %v59 = vld [vmem:[%s0 + $0x18] sm:$0xf]
    %v60 = vld [vmem:[#allocation2] sm:$0xff]
    %v61 = vld [vmem:[#allocation2 + $0x8] sm:$0xff]
    %v62 = vld [vmem:[#allocation2 + $0x10] sm:$0xff]
    %v63 = vld [vmem:[#allocation2 + $0x18] sm:$0xff]
    %v64 = vld [vmem:[#allocation2 + $0x20] sm:$0xff]
    %v65 = vld [vmem:[#allocation2 + $0x28] sm:$0xff]
    %v66 = vld [vmem:[#allocation2 + $0x30] sm:$0xff]
    %v67 = vld [vmem:[#allocation2 + $0x38] sm:$0xff]
    %v68 = vld [vmem:[#allocation2 + $0x40] sm:$0xff]
    %v69 = vld [vmem:[#allocation2 + $0x48] sm:$0xff]
    %v70 = vld [vmem:[#allocation2 + $0x50] sm:$0xff]
    %v71 = vld [vmem:[#allocation2 + $0x58] sm:$0xff]
    %v72 = vld [vmem:[#allocation2 + $0x60] sm:$0xff]
    %v73 = vld [vmem:[#allocation2 + $0x68] sm:$0xff]
    %v74 = vld [vmem:[#allocation2 + $0x70] sm:$0xff]
    %v75 = vld [vmem:[#allocation2 + $0x78] sm:$0xff]
    %v76 = vld [vmem:[#allocation2 + $0x80] sm:$0xff]
    %v77 = vld [vmem:[#allocation2 + $0x88] sm:$0xff]
    %v78 = vld [vmem:[#allocation2 + $0x90] sm:$0xff]
    %v79 = vld [vmem:[#allocation2 + $0x98] sm:$0xff]
    %v80 = vld [vmem:[#allocation2 + $0xa0] sm:$0xff]
    %v81 = vld [vmem:[#allocation2 + $0xa8] sm:$0xff]
    %v82 = vld [vmem:[#allocation2 + $0xb0] sm:$0xff]
    %v83 = vld [vmem:[#allocation2 + $0xb8] sm:$0xff]
    %v84 = vld [vmem:[#allocation2 + $0xc0] sm:$0xff]
    %v85 = vld [vmem:[#allocation2 + $0xc8] sm:$0xff]
    %v86 = vld [vmem:[#allocation2 + $0xd0] sm:$0xff]
    %v87 = vld [vmem:[#allocation2 + $0xd8] sm:$0xff]
    %v88 = vld [vmem:[#allocation2 + $0xe0] sm:$0xff]
    %v89 = vld [vmem:[#allocation2 + $0xe8] sm:$0xff]
    %v90 = vld [vmem:[#allocation2 + $0xf0] sm:$0xff]
    %v91 = vld [vmem:[#allocation2 + $0xf8] sm:$0xff]
    %v92 = vld [vmem:[#allocation2 + $0x100] sm:$0xff]
    %v93 = vld [vmem:[#allocation2 + $0x108] sm:$0xff]
    %v94 = vld [vmem:[#allocation2 + $0x110] sm:$0xff]
    %v95 = vld [vmem:[#allocation2 + $0x118] sm:$0xff]
    %v96 = vld [vmem:[#allocation2 + $0x120] sm:$0xff]
    %v97 = vld [vmem:[#allocation2 + $0x128] sm:$0xff]
    %v98 = vld [vmem:[#allocation2 + $0x130] sm:$0xff]
    %v99 = vld [vmem:[#allocation2 + $0x138] sm:$0xff]
    %v100 = vld [vmem:[#allocation2 + $0x140] sm:$0xff]
    %v101 = vld [vmem:[#allocation2 + $0x148] sm:$0xff]
    %v102 = vld [vmem:[#allocation2 + $0x150] sm:$0xff]
    %v103 = vld [vmem:[#allocation2 + $0x158] sm:$0xff]
    %v104 = vld [vmem:[#allocation2 + $0x160] sm:$0xff]
    %v105 = vld [vmem:[#allocation2 + $0x168] sm:$0xff]
    %v106 = vld [vmem:[#allocation2 + $0x170] sm:$0xff]
    %v107 = vld [vmem:[#allocation2 + $0x178] sm:$0xff]
    %v108 = vld [vmem:[#allocation2 + $0x180] sm:$0xff]
    %v109 = vld [vmem:[#allocation2 + $0x188] sm:$0xff]
    %v110 = vld [vmem:[#allocation2 + $0x190] sm:$0xff]
    %v111 = vld [vmem:[#allocation2 + $0x198] sm:$0xff]
    %v112 = vld [vmem:[#allocation2 + $0x1a0] sm:$0xff]
    %v113 = vld [vmem:[#allocation2 + $0x1a8] sm:$0xff]
    %v114 = vld [vmem:[#allocation2 + $0x1b0] sm:$0xff]
    %v115 = vld [vmem:[#allocation2 + $0x1b8] sm:$0xff]
    %v116 = vld [vmem:[#allocation2 + $0x1c0] sm:$0xff]
    %v117 = vld [vmem:[#allocation2 + $0x1c8] sm:$0xff]
    %v118 = vld [vmem:[#allocation2 + $0x1d0] sm:$0xff]
    %v119 = vld [vmem:[#allocation2 + $0x1d8] sm:$0xff]
    %v120 = vld [vmem:[#allocation2 + $0x1e0] sm:$0xff]
    %v121 = vld [vmem:[#allocation2 + $0x1e8] sm:$0xff]
    %v122 = vld [vmem:[#allocation2 + $0x1f0] sm:$0xff]
    %v123 = vld [vmem:[#allocation2 + $0x1f8] sm:$0xff]
    %v124 = vld [vmem:[#allocation2 + $0x200] sm:$0xff]
    %v125 = vld [vmem:[#allocation2 + $0x208] sm:$0xff]
    %v126 = vld [vmem:[#allocation2 + $0x210] sm:$0xff]
    %v127 = vld [vmem:[#allocation2 + $0x218] sm:$0xff]
    %v128 = vld [vmem:[#allocation2 + $0x220] sm:$0xff]
    %v129 = vld [vmem:[#allocation2 + $0x228] sm:$0xff]
    %v130 = vld [vmem:[#allocation2 + $0x230] sm:$0xff]
    %v131 = vld [vmem:[#allocation2 + $0x238] sm:$0xff]
    %v132 = vld [vmem:[#allocation2 + $0x240] sm:$0xff]
    %v133 = vld [vmem:[#allocation2 + $0x248] sm:$0xff]
    %v134 = vld [vmem:[#allocation2 + $0x250] sm:$0xff]
    %v135 = vld [vmem:[#allocation2 + $0x258] sm:$0xff]
    %v136 = vld [vmem:[#allocation2 + $0x260] sm:$0xff]
    %v137 = vld [vmem:[#allocation2 + $0x268] sm:$0xff]
    %v138 = vld [vmem:[#allocation2 + $0x270] sm:$0xff]
    %v139 = vld [vmem:[#allocation2 + $0x278] sm:$0xff]
    %v140 = vld [vmem:[#allocation2 + $0x280] sm:$0xff]
    %v141 = vld [vmem:[#allocation2 + $0x288] sm:$0xff]
    %v142 = vld [vmem:[#allocation2 + $0x290] sm:$0xff]
    %v143 = vld [vmem:[#allocation2 + $0x298] sm:$0xff]
    %v144 = vld [vmem:[#allocation2 + $0x2a0] sm:$0xff]
    %v145 = vld [vmem:[#allocation2 + $0x2a8] sm:$0xff]
    %v146 = vld [vmem:[#allocation2 + $0x2b0] sm:$0xff]
    %v147 = vld [vmem:[#allocation2 + $0x2b8] sm:$0xff]
    %v148 = vld [vmem:[#allocation2 + $0x2c0] sm:$0xff]
    %v149 = vld [vmem:[#allocation2 + $0x2c8] sm:$0xff]
    %v150 = vld [vmem:[#allocation2 + $0x2d0] sm:$0xff]
    %v151 = vld [vmem:[#allocation2 + $0x2d8] sm:$0xff]
    %v152 = vld [vmem:[#allocation2 + $0x2e0] sm:$0xff]
    %v153 = vld [vmem:[#allocation2 + $0x2e8] sm:$0xff]
    %v154 = vld [vmem:[#allocation2 + $0x2f0] sm:$0xff]
    %v155 = vld [vmem:[#allocation2 + $0x2f8] sm:$0xff]
    %v156 = vld [vmem:[#allocation2 + $0x300] sm:$0xff]
    %v157 = vld [vmem:[#allocation2 + $0x308] sm:$0xff]
    %v158 = vld [vmem:[#allocation2 + $0x310] sm:$0xff]
    %v159 = vld [vmem:[#allocation2 + $0x318] sm:$0xff]
    %v160 = vld [vmem:[#allocation2 + $0x320] sm:$0xff]
    %v161 = vld [vmem:[#allocation2 + $0x328] sm:$0xff]
    %v162 = vld [vmem:[#allocation2 + $0x330] sm:$0xff]
    %v163 = vld [vmem:[#allocation2 + $0x338] sm:$0xff]
    %v164 = vld [vmem:[#allocation2 + $0x340] sm:$0xff]
    %v165 = vld [vmem:[#allocation2 + $0x348] sm:$0xff]
    %v166 = vld [vmem:[#allocation2 + $0x350] sm:$0xff]
    %v167 = vld [vmem:[#allocation2 + $0x358] sm:$0xff]
    %v168 = vld [vmem:[#allocation2 + $0x360] sm:$0xff]
    %v169 = vld [vmem:[#allocation2 + $0x368] sm:$0xff]
    %v170 = vld [vmem:[#allocation2 + $0x370] sm:$0xff]
    %v171 = vld [vmem:[#allocation2 + $0x378] sm:$0xff]
    %v172 = vld [vmem:[#allocation2 + $0x380] sm:$0xff]
    %v173 = vld [vmem:[#allocation2 + $0x388] sm:$0xff]
    %v174 = vld [vmem:[#allocation2 + $0x390] sm:$0xff]
    %v175 = vld [vmem:[#allocation2 + $0x398] sm:$0xff]
    %v176 = vld [vmem:[#allocation2 + $0x3a0] sm:$0xff]
    %v177 = vld [vmem:[#allocation2 + $0x3a8] sm:$0xff]
    %v178 = vld [vmem:[#allocation2 + $0x3b0] sm:$0xff]
    %v179 = vld [vmem:[#allocation2 + $0x3b8] sm:$0xff]
    %v180 = vld [vmem:[#allocation2 + $0x3c0] sm:$0xff]
    %v181 = vld [vmem:[#allocation2 + $0x3c8] sm:$0xff]
    %v182 = vld [vmem:[#allocation2 + $0x3d0] sm:$0xff]
    %v183 = vld [vmem:[#allocation2 + $0x3d8] sm:$0xff]
    %v184 = vld [vmem:[#allocation2 + $0x3e0] sm:$0xff]
    %v185 = vld [vmem:[#allocation2 + $0x3e8] sm:$0xff]
    %v186 = vld [vmem:[#allocation2 + $0x3f0] sm:$0xff]
    %v187 = vld [vmem:[#allocation2 + $0x3f8] sm:$0xff]
    %v188 = vld [vmem:[#allocation2 + $0x400] sm:$0xff]
    %v189 = vld [vmem:[#allocation2 + $0x408] sm:$0xff]
    %v190 = vld [vmem:[#allocation2 + $0x410] sm:$0xff]
    %v191 = vld [vmem:[#allocation2 + $0x418] sm:$0xff]
    %v192 = vld [vmem:[#allocation2 + $0x420] sm:$0xff]
    %v193 = vld [vmem:[#allocation2 + $0x428] sm:$0xff]
    %v194 = vld [vmem:[#allocation2 + $0x430] sm:$0xff]
    %v195 = vld [vmem:[#allocation2 + $0x438] sm:$0xff]
    %v196 = vld [vmem:[#allocation2 + $0x440] sm:$0xff]
    %v197 = vld [vmem:[#allocation2 + $0x448] sm:$0xff]
    %v198 = vld [vmem:[#allocation2 + $0x450] sm:$0xff]
    %v199 = vld [vmem:[#allocation2 + $0x458] sm:$0xff]
    %v200 = vld [vmem:[#allocation2 + $0x460] sm:$0xff]
    %v201 = vld [vmem:[#allocation2 + $0x468] sm:$0xff]
    %v202 = vld [vmem:[#allocation2 + $0x470] sm:$0xff]
    %v203 = vld [vmem:[#allocation2 + $0x478] sm:$0xff]
    %v204 = vld [vmem:[#allocation2 + $0x480] sm:$0xff]
    %v205 = vld [vmem:[#allocation2 + $0x488] sm:$0xff]
    %v206 = vld [vmem:[#allocation2 + $0x490] sm:$0xff]
    %v207 = vld [vmem:[#allocation2 + $0x498] sm:$0xff]
    %v208 = vld [vmem:[#allocation2 + $0x4a0] sm:$0xff]
    %v209 = vld [vmem:[#allocation2 + $0x4a8] sm:$0xff]
    %v210 = vld [vmem:[#allocation2 + $0x4b0] sm:$0xff]
    %v211 = vld [vmem:[#allocation2 + $0x4b8] sm:$0xff]
    %v212 = vld [vmem:[#allocation2 + $0x4c0] sm:$0xff]
    %v213 = vld [vmem:[#allocation2 + $0x4c8] sm:$0xff]
    %v214 = vld [vmem:[#allocation2 + $0x4d0] sm:$0xff]
    %v215 = vld [vmem:[#allocation2 + $0x4d8] sm:$0xff]
    %v216 = vld [vmem:[#allocation2 + $0x4e0] sm:$0xff]
    %v217 = vld [vmem:[#allocation2 + $0x4e8] sm:$0xff]
    %v218 = vld [vmem:[#allocation2 + $0x4f0] sm:$0xff]
    %v219 = vld [vmem:[#allocation2 + $0x4f8] sm:$0xff]
    %v220 = vld [vmem:[#allocation2 + $0x500] sm:$0xff]
    %v221 = vld [vmem:[#allocation2 + $0x508] sm:$0xff]
    %v222 = vld [vmem:[#allocation2 + $0x510] sm:$0xff]
    %v223 = vld [vmem:[#allocation2 + $0x518] sm:$0xff]
    %v224 = vld [vmem:[#allocation2 + $0x520] sm:$0xff]
    %v225 = vld [vmem:[#allocation2 + $0x528] sm:$0xff]
    %v226 = vld [vmem:[#allocation2 + $0x530] sm:$0xff]
    %v227 = vld [vmem:[#allocation2 + $0x538] sm:$0xff]
    %v228 = vld [vmem:[#allocation2 + $0x540] sm:$0xff]
    %v229 = vld [vmem:[#allocation2 + $0x548] sm:$0xff]
    %v230 = vld [vmem:[#allocation2 + $0x550] sm:$0xff]
    %v231 = vld [vmem:[#allocation2 + $0x558] sm:$0xff]
    %v232 = vld [vmem:[#allocation2 + $0x560] sm:$0xff]
    %v233 = vld [vmem:[#allocation2 + $0x568] sm:$0xff]
    %v234 = vld [vmem:[#allocation2 + $0x570] sm:$0xff]
    %v235 = vld [vmem:[#allocation2 + $0x578] sm:$0xff]
    %v236 = vld [vmem:[#allocation2 + $0x580] sm:$0xff]
    %v237 = vld [vmem:[#allocation2 + $0x588] sm:$0xff]
    %v238 = vld [vmem:[#allocation2 + $0x590] sm:$0xff]
    %v239 = vld [vmem:[#allocation2 + $0x598] sm:$0xff]
    %v240 = vld [vmem:[#allocation2 + $0x5a0] sm:$0xff]
    %v241 = vld [vmem:[#allocation2 + $0x5a8] sm:$0xff]
    %v242 = vld [vmem:[#allocation2 + $0x5b0] sm:$0xff]
    %v243 = vld [vmem:[#allocation2 + $0x5b8] sm:$0xff]
    %v244 = vld [vmem:[#allocation2 + $0x5c0] sm:$0xff]
    %v245 = vld [vmem:[#allocation2 + $0x5c8] sm:$0xff]
    %v246 = vld [vmem:[#allocation2 + $0x5d0] sm:$0xff]
    %v247 = vld [vmem:[#allocation2 + $0x5d8] sm:$0xff]
    %v248 = vld [vmem:[#allocation2 + $0x5e0] sm:$0xff]
    %v249 = vld [vmem:[#allocation2 + $0x5e8] sm:$0xff]
    %v250 = vld [vmem:[#allocation2 + $0x5f0] sm:$0xff]
    %v251 = vld [vmem:[#allocation2 + $0x5f8] sm:$0xff]
    %v252 = vld [vmem:[#allocation2 + $0x600] sm:$0xff]
    %v253 = vld [vmem:[#allocation2 + $0x608] sm:$0xff]
    %v254 = vld [vmem:[#allocation2 + $0x610] sm:$0xff]
    %v255 = vld [vmem:[#allocation2 + $0x618] sm:$0xff]
    %v256 = vld [vmem:[%s2] sm:$0xf]
    %v258 = vlaneseq
    %v259 = vshrl.u32 %v258, 7
    %v260 = vsub.s32 0, %v259
    %v261 = vrot.slane %v256, %v260
    %v262 = vlaneseq
    %v263 = vshrl.u32 %v262, 7
    %v264 = vsub.s32 1, %v263
    %v265 = vrot.slane %v256, %v264
    %v266 = vlaneseq
    %v267 = vshrl.u32 %v266, 7
    %v268 = vsub.s32 2, %v267
    %v269 = vrot.slane %v256, %v268
    %v270 = vlaneseq
    %v271 = vshrl.u32 %v270, 7
    %v272 = vsub.s32 3, %v271
    %v273 = vrot.slane %v256, %v272
    %v282 = vunpack.c.l.b16 %v56
    %v283 = vunpack.c.h.b16 %v56
    %v284 = vunpack.c.l.b16 %v57
    %v285 = vunpack.c.h.b16 %v57
    %v286 = vunpack.c.l.b16 %v58
    %v287 = vunpack.c.h.b16 %v58
    %v288 = vunpack.c.l.b16 %v59
    %v289 = vpack.c.b16 %v282, %v282
    %v290 = vpack.c.b16 %v283, %v283
    %v291 = vpack.c.b16 %v284, %v284
    %v292 = vpack.c.b16 %v285, %v285
    %v293 = vpack.c.b16 %v286, %v286
    %v294 = vpack.c.b16 %v287, %v287
    %v295 = vpack.c.b16 %v288, %v288
    %v498 = vunpack.c.l.b16 %v60
    %v499 = vunpack.c.h.b16 %v60
    %v500 = vunpack.c.l.b16 %v61
    %v501 = vunpack.c.h.b16 %v61
    %v502 = vunpack.c.l.b16 %v62
    %v503 = vunpack.c.h.b16 %v62
    %v504 = vunpack.c.l.b16 %v63
    %v505 = vunpack.c.h.b16 %v63
    %v506 = vunpack.c.l.b16 %v64
    %v507 = vunpack.c.h.b16 %v64
    %v508 = vunpack.c.l.b16 %v65
    %v509 = vunpack.c.h.b16 %v65
    %v510 = vunpack.c.l.b16 %v66
    %v511 = vunpack.c.h.b16 %v66
    %v512 = vunpack.c.l.b16 %v67
    %v513 = vunpack.c.h.b16 %v67
    %v514 = vunpack.c.l.b16 %v68
    %v515 = vunpack.c.h.b16 %v68
    %v516 = vunpack.c.l.b16 %v69
    %v517 = vunpack.c.h.b16 %v69
    %v518 = vunpack.c.l.b16 %v70
    %v519 = vunpack.c.h.b16 %v70
    %v520 = vunpack.c.l.b16 %v71
    %v521 = vunpack.c.h.b16 %v71
    %v522 = vunpack.c.l.b16 %v72
    %v523 = vunpack.c.h.b16 %v72
    %v524 = vunpack.c.l.b16 %v73
    %v525 = vunpack.c.h.b16 %v73
    %v526 = vunpack.c.l.b16 %v74
    %v527 = vunpack.c.h.b16 %v74
    %v528 = vunpack.c.l.b16 %v75
    %v529 = vunpack.c.h.b16 %v75
    %v530 = vunpack.c.l.b16 %v76
    %v531 = vunpack.c.h.b16 %v76
    %v532 = vunpack.c.l.b16 %v77
    %v533 = vunpack.c.h.b16 %v77
    %v534 = vunpack.c.l.b16 %v78
    %v535 = vunpack.c.h.b16 %v78
    %v536 = vunpack.c.l.b16 %v79
    %v537 = vunpack.c.h.b16 %v79
    %v538 = vunpack.c.l.b16 %v80
    %v539 = vunpack.c.h.b16 %v80
    %v540 = vunpack.c.l.b16 %v81
    %v541 = vunpack.c.h.b16 %v81
    %v542 = vunpack.c.l.b16 %v82
    %v543 = vunpack.c.h.b16 %v82
    %v544 = vunpack.c.l.b16 %v83
    %v545 = vunpack.c.h.b16 %v83
    %v546 = vunpack.c.l.b16 %v84
    %v547 = vunpack.c.h.b16 %v84
    %v548 = vunpack.c.l.b16 %v85
    %v549 = vunpack.c.h.b16 %v85
    %v550 = vunpack.c.l.b16 %v86
    %v551 = vunpack.c.h.b16 %v86
    %v552 = vunpack.c.l.b16 %v87
    %v553 = vunpack.c.h.b16 %v87
    %v554 = vunpack.c.l.b16 %v88
    %v555 = vunpack.c.h.b16 %v88
    %v556 = vunpack.c.l.b16 %v89
    %v557 = vunpack.c.h.b16 %v89
    %v558 = vunpack.c.l.b16 %v90
    %v559 = vunpack.c.h.b16 %v90
    %v560 = vunpack.c.l.b16 %v91
    %v561 = vunpack.c.h.b16 %v91
    %v562 = vunpack.c.l.b16 %v92
    %v563 = vunpack.c.h.b16 %v92
    %v564 = vunpack.c.l.b16 %v93
    %v565 = vunpack.c.h.b16 %v93
    %v566 = vunpack.c.l.b16 %v94
    %v567 = vunpack.c.h.b16 %v94
    %v568 = vunpack.c.l.b16 %v95
    %v569 = vunpack.c.h.b16 %v95
    %v570 = vunpack.c.l.b16 %v96
    %v571 = vunpack.c.h.b16 %v96
    %v572 = vunpack.c.l.b16 %v97
    %v573 = vunpack.c.h.b16 %v97
    %v574 = vunpack.c.l.b16 %v98
    %v575 = vunpack.c.h.b16 %v98
    %v576 = vunpack.c.l.b16 %v99
    %v577 = vunpack.c.h.b16 %v99
    %v578 = vunpack.c.l.b16 %v100
    %v579 = vunpack.c.h.b16 %v100
    %v580 = vunpack.c.l.b16 %v101
    %v581 = vunpack.c.h.b16 %v101
    %v582 = vunpack.c.l.b16 %v102
    %v583 = vunpack.c.h.b16 %v102
    %v584 = vunpack.c.l.b16 %v103
    %v585 = vunpack.c.h.b16 %v103
    %v586 = vunpack.c.l.b16 %v104
    %v587 = vunpack.c.h.b16 %v104
    %v588 = vunpack.c.l.b16 %v105
    %v589 = vunpack.c.h.b16 %v105
    %v590 = vunpack.c.l.b16 %v106
    %v591 = vunpack.c.h.b16 %v106
    %v592 = vunpack.c.l.b16 %v107
    %v593 = vunpack.c.h.b16 %v107
    %v594 = vunpack.c.l.b16 %v108
    %v595 = vunpack.c.h.b16 %v108
    %v596 = vunpack.c.l.b16 %v109
    %v597 = vunpack.c.h.b16 %v109
    %v598 = vunpack.c.l.b16 %v110
    %v599 = vunpack.c.h.b16 %v110
    %v600 = vunpack.c.l.b16 %v111
    %v601 = vunpack.c.h.b16 %v111
    %v602 = vunpack.c.l.b16 %v112
    %v603 = vunpack.c.h.b16 %v112
    %v604 = vunpack.c.l.b16 %v113
    %v605 = vunpack.c.h.b16 %v113
    %v606 = vunpack.c.l.b16 %v114
    %v607 = vunpack.c.h.b16 %v114
    %v608 = vunpack.c.l.b16 %v115
    %v609 = vunpack.c.h.b16 %v115
    %v610 = vunpack.c.l.b16 %v116
    %v611 = vunpack.c.h.b16 %v116
    %v612 = vunpack.c.l.b16 %v117
    %v613 = vunpack.c.h.b16 %v117
    %v614 = vunpack.c.l.b16 %v118
    %v615 = vunpack.c.h.b16 %v118
    %v616 = vunpack.c.l.b16 %v119
    %v617 = vunpack.c.h.b16 %v119
    %v618 = vunpack.c.l.b16 %v120
    %v619 = vunpack.c.h.b16 %v120
    %v620 = vunpack.c.l.b16 %v121
    %v621 = vunpack.c.h.b16 %v121
    %v622 = vunpack.c.l.b16 %v122
    %v623 = vunpack.c.h.b16 %v122
    %v624 = vunpack.c.l.b16 %v123
    %v625 = vunpack.c.h.b16 %v123
    %v626 = vunpack.c.l.b16 %v124
    %v627 = vunpack.c.h.b16 %v124
    %v628 = vunpack.c.l.b16 %v125
    %v629 = vunpack.c.h.b16 %v125
    %v630 = vunpack.c.l.b16 %v126
    %v631 = vunpack.c.h.b16 %v126
    %v632 = vunpack.c.l.b16 %v127
    %v633 = vunpack.c.h.b16 %v127
    %v634 = vunpack.c.l.b16 %v128
    %v635 = vunpack.c.h.b16 %v128
    %v636 = vunpack.c.l.b16 %v129
    %v637 = vunpack.c.h.b16 %v129
    %v638 = vunpack.c.l.b16 %v130
    %v639 = vunpack.c.h.b16 %v130
    %v640 = vunpack.c.l.b16 %v131
    %v641 = vunpack.c.h.b16 %v131
    %v642 = vunpack.c.l.b16 %v132
    %v643 = vunpack.c.h.b16 %v132
    %v644 = vunpack.c.l.b16 %v133
    %v645 = vunpack.c.h.b16 %v133
    %v646 = vunpack.c.l.b16 %v134
    %v647 = vunpack.c.h.b16 %v134
    %v648 = vunpack.c.l.b16 %v135
    %v649 = vunpack.c.h.b16 %v135
    %v650 = vunpack.c.l.b16 %v136
    %v651 = vunpack.c.h.b16 %v136
    %v652 = vunpack.c.l.b16 %v137
    %v653 = vunpack.c.h.b16 %v137
    %v654 = vunpack.c.l.b16 %v138
    %v655 = vunpack.c.h.b16 %v138
    %v656 = vunpack.c.l.b16 %v139
    %v657 = vunpack.c.h.b16 %v139
    %v658 = vunpack.c.l.b16 %v140
    %v659 = vunpack.c.h.b16 %v140
    %v660 = vunpack.c.l.b16 %v141
    %v661 = vunpack.c.h.b16 %v141
    %v662 = vunpack.c.l.b16 %v142
    %v663 = vunpack.c.h.b16 %v142
    %v664 = vunpack.c.l.b16 %v143
    %v665 = vunpack.c.h.b16 %v143
    %v666 = vunpack.c.l.b16 %v144
    %v667 = vunpack.c.h.b16 %v144
    %v668 = vunpack.c.l.b16 %v145
    %v669 = vunpack.c.h.b16 %v145
    %v670 = vunpack.c.l.b16 %v146
    %v671 = vunpack.c.h.b16 %v146
    %v672 = vunpack.c.l.b16 %v147
    %v673 = vunpack.c.h.b16 %v147
    %v674 = vunpack.c.l.b16 %v148
    %v675 = vunpack.c.h.b16 %v148
    %v676 = vunpack.c.l.b16 %v149
    %v677 = vunpack.c.h.b16 %v149
    %v678 = vunpack.c.l.b16 %v150
    %v679 = vunpack.c.h.b16 %v150
    %v680 = vunpack.c.l.b16 %v151
    %v681 = vunpack.c.h.b16 %v151
    %v682 = vunpack.c.l.b16 %v152
    %v683 = vunpack.c.h.b16 %v152
    %v684 = vunpack.c.l.b16 %v153
    %v685 = vunpack.c.h.b16 %v153
    %v686 = vunpack.c.l.b16 %v154
    %v687 = vunpack.c.h.b16 %v154
    %v688 = vunpack.c.l.b16 %v155
    %v689 = vunpack.c.h.b16 %v155
    %v690 = vunpack.c.l.b16 %v156
    %v691 = vunpack.c.h.b16 %v156
    %v692 = vunpack.c.l.b16 %v157
    %v693 = vunpack.c.h.b16 %v157
    %v694 = vunpack.c.l.b16 %v158
    %v695 = vunpack.c.h.b16 %v158
    %v696 = vunpack.c.l.b16 %v159
    %v697 = vunpack.c.h.b16 %v159
    %v698 = vunpack.c.l.b16 %v160
    %v699 = vunpack.c.h.b16 %v160
    %v700 = vunpack.c.l.b16 %v161
    %v701 = vunpack.c.h.b16 %v161
    %v702 = vunpack.c.l.b16 %v162
    %v703 = vunpack.c.h.b16 %v162
    %v704 = vunpack.c.l.b16 %v163
    %v705 = vunpack.c.h.b16 %v163
    %v706 = vunpack.c.l.b16 %v164
    %v707 = vunpack.c.h.b16 %v164
    %v708 = vunpack.c.l.b16 %v165
    %v709 = vunpack.c.h.b16 %v165
    %v710 = vunpack.c.l.b16 %v166
    %v711 = vunpack.c.h.b16 %v166
    %v712 = vunpack.c.l.b16 %v167
    %v713 = vunpack.c.h.b16 %v167
    %v714 = vunpack.c.l.b16 %v168
    %v715 = vunpack.c.h.b16 %v168
    %v716 = vunpack.c.l.b16 %v169
    %v717 = vunpack.c.h.b16 %v169
    %v718 = vunpack.c.l.b16 %v170
    %v719 = vunpack.c.h.b16 %v170
    %v720 = vunpack.c.l.b16 %v171
    %v721 = vunpack.c.h.b16 %v171
    %v722 = vunpack.c.l.b16 %v172
    %v723 = vunpack.c.h.b16 %v172
    %v724 = vunpack.c.l.b16 %v173
    %v725 = vunpack.c.h.b16 %v173
    %v726 = vunpack.c.l.b16 %v174
    %v727 = vunpack.c.h.b16 %v174
    %v728 = vunpack.c.l.b16 %v175
    %v729 = vunpack.c.h.b16 %v175
    %v730 = vunpack.c.l.b16 %v176
    %v731 = vunpack.c.h.b16 %v176
    %v732 = vunpack.c.l.b16 %v177
    %v733 = vunpack.c.h.b16 %v177
    %v734 = vunpack.c.l.b16 %v178
    %v735 = vunpack.c.h.b16 %v178
    %v736 = vunpack.c.l.b16 %v179
    %v737 = vunpack.c.h.b16 %v179
    %v738 = vunpack.c.l.b16 %v180
    %v739 = vunpack.c.h.b16 %v180
    %v740 = vunpack.c.l.b16 %v181
    %v741 = vunpack.c.h.b16 %v181
    %v742 = vunpack.c.l.b16 %v182
    %v743 = vunpack.c.h.b16 %v182
    %v744 = vunpack.c.l.b16 %v183
    %v745 = vunpack.c.h.b16 %v183
    %v746 = vunpack.c.l.b16 %v184
    %v747 = vunpack.c.h.b16 %v184
    %v748 = vunpack.c.l.b16 %v185
    %v749 = vunpack.c.h.b16 %v185
    %v750 = vunpack.c.l.b16 %v186
    %v751 = vunpack.c.h.b16 %v186
    %v752 = vunpack.c.l.b16 %v187
    %v753 = vunpack.c.h.b16 %v187
    %v754 = vunpack.c.l.b16 %v188
    %v755 = vunpack.c.h.b16 %v188
    %v756 = vunpack.c.l.b16 %v189
    %v757 = vunpack.c.h.b16 %v189
    %v758 = vunpack.c.l.b16 %v190
    %v759 = vunpack.c.h.b16 %v190
    %v760 = vunpack.c.l.b16 %v191
    %v761 = vunpack.c.h.b16 %v191
    %v762 = vunpack.c.l.b16 %v192
    %v763 = vunpack.c.h.b16 %v192
    %v764 = vunpack.c.l.b16 %v193
    %v765 = vunpack.c.h.b16 %v193
    %v766 = vunpack.c.l.b16 %v194
    %v767 = vunpack.c.h.b16 %v194
    %v768 = vunpack.c.l.b16 %v195
    %v769 = vunpack.c.h.b16 %v195
    %v770 = vunpack.c.l.b16 %v196
    %v771 = vunpack.c.h.b16 %v196
    %v772 = vunpack.c.l.b16 %v197
    %v773 = vunpack.c.h.b16 %v197
    %v774 = vunpack.c.l.b16 %v198
    %v775 = vunpack.c.h.b16 %v198
    %v776 = vunpack.c.l.b16 %v199
    %v777 = vunpack.c.h.b16 %v199
    %v778 = vunpack.c.l.b16 %v200
    %v779 = vunpack.c.h.b16 %v200
    %v780 = vunpack.c.l.b16 %v201
    %v781 = vunpack.c.h.b16 %v201
    %v782 = vunpack.c.l.b16 %v202
    %v783 = vunpack.c.h.b16 %v202
    %v784 = vunpack.c.l.b16 %v203
    %v785 = vunpack.c.h.b16 %v203
    %v786 = vunpack.c.l.b16 %v204
    %v787 = vunpack.c.h.b16 %v204
    %v788 = vunpack.c.l.b16 %v205
    %v789 = vunpack.c.h.b16 %v205
    %v790 = vunpack.c.l.b16 %v206
    %v791 = vunpack.c.h.b16 %v206
    %v792 = vunpack.c.l.b16 %v207
    %v793 = vunpack.c.h.b16 %v207
    %v794 = vunpack.c.l.b16 %v208
    %v795 = vunpack.c.h.b16 %v208
    %v796 = vunpack.c.l.b16 %v209
    %v797 = vunpack.c.h.b16 %v209
    %v798 = vunpack.c.l.b16 %v210
    %v799 = vunpack.c.h.b16 %v210
    %v800 = vunpack.c.l.b16 %v211
    %v801 = vunpack.c.h.b16 %v211
    %v802 = vunpack.c.l.b16 %v212
    %v803 = vunpack.c.h.b16 %v212
    %v804 = vunpack.c.l.b16 %v213
    %v805 = vunpack.c.h.b16 %v213
    %v806 = vunpack.c.l.b16 %v214
    %v807 = vunpack.c.h.b16 %v214
    %v808 = vunpack.c.l.b16 %v215
    %v809 = vunpack.c.h.b16 %v215
    %v810 = vunpack.c.l.b16 %v216
    %v811 = vunpack.c.h.b16 %v216
    %v812 = vunpack.c.l.b16 %v217
    %v813 = vunpack.c.h.b16 %v217
    %v814 = vunpack.c.l.b16 %v218
    %v815 = vunpack.c.h.b16 %v218
    %v816 = vunpack.c.l.b16 %v219
    %v817 = vunpack.c.h.b16 %v219
    %v818 = vunpack.c.l.b16 %v220
    %v819 = vunpack.c.h.b16 %v220
    %v820 = vunpack.c.l.b16 %v221
    %v821 = vunpack.c.h.b16 %v221
    %v822 = vunpack.c.l.b16 %v222
    %v823 = vunpack.c.h.b16 %v222
    %v824 = vunpack.c.l.b16 %v223
    %v825 = vunpack.c.h.b16 %v223
    %v826 = vunpack.c.l.b16 %v224
    %v827 = vunpack.c.h.b16 %v224
    %v828 = vunpack.c.l.b16 %v225
    %v829 = vunpack.c.h.b16 %v225
    %v830 = vunpack.c.l.b16 %v226
    %v831 = vunpack.c.h.b16 %v226
    %v832 = vunpack.c.l.b16 %v227
    %v833 = vunpack.c.h.b16 %v227
    %v834 = vunpack.c.l.b16 %v228
    %v835 = vunpack.c.h.b16 %v228
    %v836 = vunpack.c.l.b16 %v229
    %v837 = vunpack.c.h.b16 %v229
    %v838 = vunpack.c.l.b16 %v230
    %v839 = vunpack.c.h.b16 %v230
    %v840 = vunpack.c.l.b16 %v231
    %v841 = vunpack.c.h.b16 %v231
    %v842 = vunpack.c.l.b16 %v232
    %v843 = vunpack.c.h.b16 %v232
    %v844 = vunpack.c.l.b16 %v233
    %v845 = vunpack.c.h.b16 %v233
    %v846 = vunpack.c.l.b16 %v234
    %v847 = vunpack.c.h.b16 %v234
    %v848 = vunpack.c.l.b16 %v235
    %v849 = vunpack.c.h.b16 %v235
    %v850 = vunpack.c.l.b16 %v236
    %v851 = vunpack.c.h.b16 %v236
    %v852 = vunpack.c.l.b16 %v237
    %v853 = vunpack.c.h.b16 %v237
    %v854 = vunpack.c.l.b16 %v238
    %v855 = vunpack.c.h.b16 %v238
    %v856 = vunpack.c.l.b16 %v239
    %v857 = vunpack.c.h.b16 %v239
    %v858 = vunpack.c.l.b16 %v240
    %v859 = vunpack.c.h.b16 %v240
    %v860 = vunpack.c.l.b16 %v241
    %v861 = vunpack.c.h.b16 %v241
    %v862 = vunpack.c.l.b16 %v242
    %v863 = vunpack.c.h.b16 %v242
    %v864 = vunpack.c.l.b16 %v243
    %v865 = vunpack.c.h.b16 %v243
    %v866 = vunpack.c.l.b16 %v244
    %v867 = vunpack.c.h.b16 %v244
    %v868 = vunpack.c.l.b16 %v245
    %v869 = vunpack.c.h.b16 %v245
    %v870 = vunpack.c.l.b16 %v246
    %v871 = vunpack.c.h.b16 %v246
    %v872 = vunpack.c.l.b16 %v247
    %v873 = vunpack.c.h.b16 %v247
    %v874 = vunpack.c.l.b16 %v248
    %v875 = vunpack.c.h.b16 %v248
    %v876 = vunpack.c.l.b16 %v249
    %v877 = vunpack.c.h.b16 %v249
    %v878 = vunpack.c.l.b16 %v250
    %v879 = vunpack.c.h.b16 %v250
    %v880 = vunpack.c.l.b16 %v251
    %v881 = vunpack.c.h.b16 %v251
    %v882 = vunpack.c.l.b16 %v252
    %v883 = vunpack.c.h.b16 %v252
    %v884 = vunpack.c.l.b16 %v253
    %v885 = vunpack.c.h.b16 %v253
    %v886 = vunpack.c.l.b16 %v254
    %v887 = vunpack.c.h.b16 %v254
    %v888 = vunpack.c.l.b16 %v255
    %v889 = vunpack.c.h.b16 %v255
    %v890 = vpack.c.b16 %v502, %v498
    %v891 = vpack.c.b16 %v503, %v499
    %v892 = vpack.c.b16 %v504, %v500
    %v893 = vpack.c.b16 %v505, %v501
    %v894 = vpack.c.b16 %v510, %v506
    %v895 = vpack.c.b16 %v511, %v507
    %v896 = vpack.c.b16 %v512, %v508
    %v897 = vpack.c.b16 %v513, %v509
    %v898 = vpack.c.b16 %v518, %v514
    %v899 = vpack.c.b16 %v519, %v515
    %v900 = vpack.c.b16 %v520, %v516
    %v901 = vpack.c.b16 %v521, %v517
    %v902 = vpack.c.b16 %v526, %v522
    %v903 = vpack.c.b16 %v527, %v523
    %v904 = vpack.c.b16 %v528, %v524
    %v905 = vpack.c.b16 %v529, %v525
    %v906 = vpack.c.b16 %v534, %v530
    %v907 = vpack.c.b16 %v535, %v531
    %v908 = vpack.c.b16 %v536, %v532
    %v909 = vpack.c.b16 %v537, %v533
    %v910 = vpack.c.b16 %v542, %v538
    %v911 = vpack.c.b16 %v543, %v539
    %v912 = vpack.c.b16 %v544, %v540
    %v913 = vpack.c.b16 %v545, %v541
    %v914 = vpack.c.b16 %v550, %v546
    %v915 = vpack.c.b16 %v551, %v547
    %v916 = vpack.c.b16 %v552, %v548
    %v917 = vpack.c.b16 %v553, %v549
    %v918 = vpack.c.b16 %v558, %v554
    %v919 = vpack.c.b16 %v559, %v555
    %v920 = vpack.c.b16 %v560, %v556
    %v921 = vpack.c.b16 %v561, %v557
    %v922 = vpack.c.b16 %v566, %v562
    %v923 = vpack.c.b16 %v567, %v563
    %v924 = vpack.c.b16 %v568, %v564
    %v925 = vpack.c.b16 %v569, %v565
    %v926 = vpack.c.b16 %v574, %v570
    %v927 = vpack.c.b16 %v575, %v571
    %v928 = vpack.c.b16 %v576, %v572
    %v929 = vpack.c.b16 %v577, %v573
    %v930 = vpack.c.b16 %v582, %v578
    %v931 = vpack.c.b16 %v583, %v579
    %v932 = vpack.c.b16 %v584, %v580
    %v933 = vpack.c.b16 %v585, %v581
    %v934 = vpack.c.b16 %v590, %v586
    %v935 = vpack.c.b16 %v591, %v587
    %v936 = vpack.c.b16 %v592, %v588
    %v937 = vpack.c.b16 %v593, %v589
    %v938 = vpack.c.b16 %v598, %v594
    %v939 = vpack.c.b16 %v599, %v595
    %v940 = vpack.c.b16 %v600, %v596
    %v941 = vpack.c.b16 %v601, %v597
    %v942 = vpack.c.b16 %v606, %v602
    %v943 = vpack.c.b16 %v607, %v603
    %v944 = vpack.c.b16 %v608, %v604
    %v945 = vpack.c.b16 %v609, %v605
    %v946 = vpack.c.b16 %v614, %v610
    %v947 = vpack.c.b16 %v615, %v611
    %v948 = vpack.c.b16 %v616, %v612
    %v949 = vpack.c.b16 %v617, %v613
    %v950 = vpack.c.b16 %v622, %v618
    %v951 = vpack.c.b16 %v623, %v619
    %v952 = vpack.c.b16 %v624, %v620
    %v953 = vpack.c.b16 %v625, %v621
    %v954 = vpack.c.b16 %v630, %v626
    %v955 = vpack.c.b16 %v631, %v627
    %v956 = vpack.c.b16 %v632, %v628
    %v957 = vpack.c.b16 %v633, %v629
    %v958 = vpack.c.b16 %v638, %v634
    %v959 = vpack.c.b16 %v639, %v635
    %v960 = vpack.c.b16 %v640, %v636
    %v961 = vpack.c.b16 %v641, %v637
    %v962 = vpack.c.b16 %v646, %v642
    %v963 = vpack.c.b16 %v647, %v643
    %v964 = vpack.c.b16 %v648, %v644
    %v965 = vpack.c.b16 %v649, %v645
    %v966 = vpack.c.b16 %v654, %v650
    %v967 = vpack.c.b16 %v655, %v651
    %v968 = vpack.c.b16 %v656, %v652
    %v969 = vpack.c.b16 %v657, %v653
    %v970 = vpack.c.b16 %v662, %v658
    %v971 = vpack.c.b16 %v663, %v659
    %v972 = vpack.c.b16 %v664, %v660
    %v973 = vpack.c.b16 %v665, %v661
    %v974 = vpack.c.b16 %v670, %v666
    %v975 = vpack.c.b16 %v671, %v667
    %v976 = vpack.c.b16 %v672, %v668
    %v977 = vpack.c.b16 %v673, %v669
    %v978 = vpack.c.b16 %v678, %v674
    %v979 = vpack.c.b16 %v679, %v675
    %v980 = vpack.c.b16 %v680, %v676
    %v981 = vpack.c.b16 %v681, %v677
    %v982 = vpack.c.b16 %v686, %v682
    %v983 = vpack.c.b16 %v687, %v683
    %v984 = vpack.c.b16 %v688, %v684
    %v985 = vpack.c.b16 %v689, %v685
    %v986 = vpack.c.b16 %v694, %v690
    %v987 = vpack.c.b16 %v695, %v691
    %v988 = vpack.c.b16 %v696, %v692
    %v989 = vpack.c.b16 %v697, %v693
    %v990 = vpack.c.b16 %v702, %v698
    %v991 = vpack.c.b16 %v703, %v699
    %v992 = vpack.c.b16 %v704, %v700
    %v993 = vpack.c.b16 %v705, %v701
    %v994 = vpack.c.b16 %v710, %v706
    %v995 = vpack.c.b16 %v711, %v707
    %v996 = vpack.c.b16 %v712, %v708
    %v997 = vpack.c.b16 %v713, %v709
    %v998 = vpack.c.b16 %v718, %v714
    %v999 = vpack.c.b16 %v719, %v715
    %v1000 = vpack.c.b16 %v720, %v716
    %v1001 = vpack.c.b16 %v721, %v717
    %v1002 = vpack.c.b16 %v726, %v722
    %v1003 = vpack.c.b16 %v727, %v723
    %v1004 = vpack.c.b16 %v728, %v724
    %v1005 = vpack.c.b16 %v729, %v725
    %v1006 = vpack.c.b16 %v734, %v730
    %v1007 = vpack.c.b16 %v735, %v731
    %v1008 = vpack.c.b16 %v736, %v732
    %v1009 = vpack.c.b16 %v737, %v733
    %v1010 = vpack.c.b16 %v742, %v738
    %v1011 = vpack.c.b16 %v743, %v739
    %v1012 = vpack.c.b16 %v744, %v740
    %v1013 = vpack.c.b16 %v745, %v741
    %v1014 = vpack.c.b16 %v750, %v746
    %v1015 = vpack.c.b16 %v751, %v747
    %v1016 = vpack.c.b16 %v752, %v748
    %v1017 = vpack.c.b16 %v753, %v749
    %v1018 = vpack.c.b16 %v758, %v754
    %v1019 = vpack.c.b16 %v759, %v755
    %v1020 = vpack.c.b16 %v760, %v756
    %v1021 = vpack.c.b16 %v761, %v757
    %v1022 = vpack.c.b16 %v766, %v762
    %v1023 = vpack.c.b16 %v767, %v763
    %v1024 = vpack.c.b16 %v768, %v764
    %v1025 = vpack.c.b16 %v769, %v765
    %v1026 = vpack.c.b16 %v774, %v770
    %v1027 = vpack.c.b16 %v775, %v771
    %v1028 = vpack.c.b16 %v776, %v772
    %v1029 = vpack.c.b16 %v777, %v773
    %v1030 = vpack.c.b16 %v782, %v778
    %v1031 = vpack.c.b16 %v783, %v779
    %v1032 = vpack.c.b16 %v784, %v780
    %v1033 = vpack.c.b16 %v785, %v781
    %v1034 = vpack.c.b16 %v790, %v786
    %v1035 = vpack.c.b16 %v791, %v787
    %v1036 = vpack.c.b16 %v792, %v788
    %v1037 = vpack.c.b16 %v793, %v789
    %v1038 = vpack.c.b16 %v798, %v794
    %v1039 = vpack.c.b16 %v799, %v795
    %v1040 = vpack.c.b16 %v800, %v796
    %v1041 = vpack.c.b16 %v801, %v797
    %v1042 = vpack.c.b16 %v806, %v802
    %v1043 = vpack.c.b16 %v807, %v803
    %v1044 = vpack.c.b16 %v808, %v804
    %v1045 = vpack.c.b16 %v809, %v805
    %v1046 = vpack.c.b16 %v814, %v810
    %v1047 = vpack.c.b16 %v815, %v811
    %v1048 = vpack.c.b16 %v816, %v812
    %v1049 = vpack.c.b16 %v817, %v813
    %v1050 = vpack.c.b16 %v822, %v818
    %v1051 = vpack.c.b16 %v823, %v819
    %v1052 = vpack.c.b16 %v824, %v820
    %v1053 = vpack.c.b16 %v825, %v821
    %v1054 = vpack.c.b16 %v830, %v826
    %v1055 = vpack.c.b16 %v831, %v827
    %v1056 = vpack.c.b16 %v832, %v828
    %v1057 = vpack.c.b16 %v833, %v829
    %v1058 = vpack.c.b16 %v838, %v834
    %v1059 = vpack.c.b16 %v839, %v835
    %v1060 = vpack.c.b16 %v840, %v836
    %v1061 = vpack.c.b16 %v841, %v837
    %v1062 = vpack.c.b16 %v846, %v842
    %v1063 = vpack.c.b16 %v847, %v843
    %v1064 = vpack.c.b16 %v848, %v844
    %v1065 = vpack.c.b16 %v849, %v845
    %v1066 = vpack.c.b16 %v854, %v850
    %v1067 = vpack.c.b16 %v855, %v851
    %v1068 = vpack.c.b16 %v856, %v852
    %v1069 = vpack.c.b16 %v857, %v853
    %v1070 = vpack.c.b16 %v862, %v858
    %v1071 = vpack.c.b16 %v863, %v859
    %v1072 = vpack.c.b16 %v864, %v860
    %v1073 = vpack.c.b16 %v865, %v861
    %v1074 = vpack.c.b16 %v870, %v866
    %v1075 = vpack.c.b16 %v871, %v867
    %v1076 = vpack.c.b16 %v872, %v868
    %v1077 = vpack.c.b16 %v873, %v869
    %v1078 = vpack.c.b16 %v878, %v874
    %v1079 = vpack.c.b16 %v879, %v875
    %v1080 = vpack.c.b16 %v880, %v876
    %v1081 = vpack.c.b16 %v881, %v877
    %v1082 = vpack.c.b16 %v886, %v882
    %v1083 = vpack.c.b16 %v887, %v883
    %v1084 = vpack.c.b16 %v888, %v884
    %v1085 = vpack.c.b16 %v889, %v885
    %vm1282 = vcmask 130048
    %v1284 = vsel %vm1282, %v295, 0
    %1286 = vmatprep.subr.bf16.mxu0 %v891
    %1287 = vmatpush1.bf16.msra.mxu0 %v890
    %1288 = vmatprep.subr.bf16.mxu0 %v895
    %1289 = vmatpush1.bf16.msra.mxu0 %v894
    %1290 = vmatprep.subr.bf16.mxu0 %v899
    %1291 = vmatpush1.bf16.msra.mxu0 %v898
    %1292 = vmatprep.subr.bf16.mxu0 %v903
    %1293 = vmatpush1.bf16.msra.mxu0 %v902
    %1294 = vmatprep.subr.bf16.mxu0 %v907
    %1295 = vmatpush1.bf16.msra.mxu0 %v906
    %1296 = vmatprep.subr.bf16.mxu0 %v911
    %1297 = vmatpush1.bf16.msra.mxu0 %v910
    %1298 = vmatprep.subr.bf16.mxu0 %v915
    %1299 = vmatpush1.bf16.msra.mxu0 %v914
    %1300 = vmatprep.subr.bf16.mxu0 %v919
    %1301 = vmatpush1.bf16.msra.mxu0 %v918
    %1302 = vmatprep.subr.bf16.mxu0 %v923
    %1303 = vmatpush1.bf16.msra.mxu0 %v922
    %1304 = vmatprep.subr.bf16.mxu0 %v927
    %1305 = vmatpush1.bf16.msra.mxu0 %v926
    %1306 = vmatprep.subr.bf16.mxu0 %v931
    %1307 = vmatpush1.bf16.msra.mxu0 %v930
    %1308 = vmatprep.subr.bf16.mxu0 %v935
    %1309 = vmatpush1.bf16.msra.mxu0 %v934
    %1310 = vmatprep.subr.bf16.mxu0 %v939
    %1311 = vmatpush1.bf16.msra.mxu0 %v938
    %1312 = vmatprep.subr.bf16.mxu0 %v943
    %1313 = vmatpush1.bf16.msra.mxu0 %v942
    %1314 = vmatprep.subr.bf16.mxu0 %v947
    %1315 = vmatpush1.bf16.msra.mxu0 %v946
    %1316 = vmatprep.subr.bf16.mxu0 %v951
    %1317 = vmatpush1.bf16.msra.mxu0 %v950
    %1318 = vmatprep.mubr.bf16.mxu0 %v290
    %1319 = vmatmul.mubr.bf16.gmra.mrb[0].mxu0 %v289
    %v1320 = vpop.f32.mrb[0].mxu0
    %v1321 = vadd.f32 %v261, %v1320
    %v1322 = vpop.f32.mrb[0].mxu0
    %v1323 = vadd.f32 %v265, %v1322
    %v1324 = vpop.f32.mrb[0].mxu0
    %v1325 = vpop.f32.mrb[0].mxu0
    %1326 = vdwg.mxu0
    %1327 = vmatprep.subr.bf16.mxu0 %v955
    %1328 = vmatpush1.bf16.msra.mxu0 %v954
    %1329 = vmatprep.subr.bf16.mxu0 %v959
    %1330 = vmatpush1.bf16.msra.mxu0 %v958
    %1331 = vmatprep.subr.bf16.mxu0 %v963
    %1332 = vmatpush1.bf16.msra.mxu0 %v962
    %1333 = vmatprep.subr.bf16.mxu0 %v967
    %1334 = vmatpush1.bf16.msra.mxu0 %v966
    %1335 = vmatprep.subr.bf16.mxu0 %v971
    %1336 = vmatpush1.bf16.msra.mxu0 %v970
    %1337 = vmatprep.subr.bf16.mxu0 %v975
    %1338 = vmatpush1.bf16.msra.mxu0 %v974
    %1339 = vmatprep.subr.bf16.mxu0 %v979
    %1340 = vmatpush1.bf16.msra.mxu0 %v978
    %1341 = vmatprep.subr.bf16.mxu0 %v983
    %1342 = vmatpush1.bf16.msra.mxu0 %v982
    %1343 = vmatprep.subr.bf16.mxu0 %v987
    %1344 = vmatpush1.bf16.msra.mxu0 %v986
    %1345 = vmatprep.subr.bf16.mxu0 %v991
    %1346 = vmatpush1.bf16.msra.mxu0 %v990
    %1347 = vmatprep.subr.bf16.mxu0 %v995
    %1348 = vmatpush1.bf16.msra.mxu0 %v994
    %1349 = vmatprep.subr.bf16.mxu0 %v999
    %1350 = vmatpush1.bf16.msra.mxu0 %v998
    %1351 = vmatprep.subr.bf16.mxu0 %v1003
    %1352 = vmatpush1.bf16.msra.mxu0 %v1002
    %1353 = vmatprep.subr.bf16.mxu0 %v1007
    %1354 = vmatpush1.bf16.msra.mxu0 %v1006
    %1355 = vmatprep.subr.bf16.mxu0 %v1011
    %1356 = vmatpush1.bf16.msra.mxu0 %v1010
    %1357 = vmatprep.subr.bf16.mxu0 %v1015
    %1358 = vmatpush1.bf16.msra.mxu0 %v1014
    %1359 = vmatprep.mubr.bf16.mxu0 %v292
    %1360 = vmatmul.mubr.bf16.gmra.mrb[0].mxu0 %v291
    %v1361 = vpop.f32.mrb[0].mxu0
    %v1362 = vadd.f32 %v1321, %v1361
    %v1363 = vpop.f32.mrb[0].mxu0
    %v1364 = vadd.f32 %v1323, %v1363
    %v1365 = vpop.f32.mrb[0].mxu0
    %v1366 = vpop.f32.mrb[0].mxu0
    %1367 = vdwg.mxu0
    %1368 = vmatprep.subr.bf16.mxu0 %v1019
    %1369 = vmatpush1.bf16.msra.mxu0 %v1018
    %1370 = vmatprep.subr.bf16.mxu0 %v1023
    %1371 = vmatpush1.bf16.msra.mxu0 %v1022
    %1372 = vmatprep.subr.bf16.mxu0 %v1027
    %1373 = vmatpush1.bf16.msra.mxu0 %v1026
    %1374 = vmatprep.subr.bf16.mxu0 %v1031
    %1375 = vmatpush1.bf16.msra.mxu0 %v1030
    %1376 = vmatprep.subr.bf16.mxu0 %v1035
    %1377 = vmatpush1.bf16.msra.mxu0 %v1034
    %1378 = vmatprep.subr.bf16.mxu0 %v1039
    %1379 = vmatpush1.bf16.msra.mxu0 %v1038
    %1380 = vmatprep.subr.bf16.mxu0 %v1043
    %1381 = vmatpush1.bf16.msra.mxu0 %v1042
    %1382 = vmatprep.subr.bf16.mxu0 %v1047
    %1383 = vmatpush1.bf16.msra.mxu0 %v1046
    %1384 = vmatprep.subr.bf16.mxu0 %v1051
    %1385 = vmatpush1.bf16.msra.mxu0 %v1050
    %1386 = vmatprep.subr.bf16.mxu0 %v1055
    %1387 = vmatpush1.bf16.msra.mxu0 %v1054
    %1388 = vmatprep.subr.bf16.mxu0 %v1059
    %1389 = vmatpush1.bf16.msra.mxu0 %v1058
    %1390 = vmatprep.subr.bf16.mxu0 %v1063
    %1391 = vmatpush1.bf16.msra.mxu0 %v1062
    %1392 = vmatprep.subr.bf16.mxu0 %v1067
    %1393 = vmatpush1.bf16.msra.mxu0 %v1066
    %1394 = vmatprep.subr.bf16.mxu0 %v1071
    %1395 = vmatpush1.bf16.msra.mxu0 %v1070
    %1396 = vmatprep.subr.bf16.mxu0 %v1075
    %1397 = vmatpush1.bf16.msra.mxu0 %v1074
    %1398 = vmatprep.subr.bf16.mxu0 %v1079
    %1399 = vmatpush1.bf16.msra.mxu0 %v1078
    %1400 = vmatprep.mubr.bf16.mxu0 %v294
    %1401 = vmatmul.mubr.bf16.gmra.mrb[0].mxu0 %v293
    %v1402 = vpop.f32.mrb[0].mxu0
    %v1403 = vadd.f32 %v1362, %v1402
    %v1404 = vpop.f32.mrb[0].mxu0
    %v1405 = vadd.f32 %v1364, %v1404
    %v1406 = vpop.f32.mrb[0].mxu0
    %v1407 = vpop.f32.mrb[0].mxu0
    %1408 = vdwg.mxu0
    %1409 = vmatprep.subr.bf16.mxu0 %v1083
    %1410 = vmatpush1.bf16.msra.mxu0 %v1082
    %1411 = vmatprep.subr.bf16.mxu0 0
    %1412 = vmatpush1.bf16.msra.mxu0 0
    %1413 = vmatprep.subr.bf16.mxu0 0
    %1414 = vmatpush1.bf16.msra.mxu0 0
    %1415 = vmatprep.subr.bf16.mxu0 0
    %1416 = vmatpush1.bf16.msra.mxu0 0
    %1417 = vmatprep.subr.bf16.mxu0 0
    %1418 = vmatpush1.bf16.msra.mxu0 0
    %1419 = vmatprep.subr.bf16.mxu0 0
    %1420 = vmatpush1.bf16.msra.mxu0 0
    %1421 = vmatprep.subr.bf16.mxu0 0
    %1422 = vmatpush1.bf16.msra.mxu0 0
    %1423 = vmatprep.subr.bf16.mxu0 0
    %1424 = vmatpush1.bf16.msra.mxu0 0
    %1425 = vmatprep.subr.bf16.mxu0 0
    %1426 = vmatpush1.bf16.msra.mxu0 0
    %1427 = vmatprep.subr.bf16.mxu0 0
    %1428 = vmatpush1.bf16.msra.mxu0 0
    %1429 = vmatprep.subr.bf16.mxu0 0
    %1430 = vmatpush1.bf16.msra.mxu0 0
    %1431 = vmatprep.subr.bf16.mxu0 0
    %1432 = vmatpush1.bf16.msra.mxu0 0
    %1433 = vmatprep.subr.bf16.mxu0 0
    %1434 = vmatpush1.bf16.msra.mxu0 0
    %1435 = vmatprep.subr.bf16.mxu0 0
    %1436 = vmatpush1.bf16.msra.mxu0 0
    %1437 = vmatprep.subr.bf16.mxu0 0
    %1438 = vmatpush1.bf16.msra.mxu0 0
    %1439 = vmatprep.subr.bf16.mxu0 0
    %1440 = vmatpush1.bf16.msra.mxu0 0
    %1441 = vmatprep.mubr.bf16.mxu0 0
    %1442 = vmatmul.mubr.bf16.gmra.mrb[0].mxu0 %v1284
    %v1443 = vpop.f32.mrb[0].mxu0
    %v1444 = vadd.f32 %v1403, %v1443
    %v1445 = vpop.f32.mrb[0].mxu0
    %v1446 = vadd.f32 %v1405, %v1445
    %v1447 = vpop.f32.mrb[0].mxu0
    %v1448 = vpop.f32.mrb[0].mxu0
    %1449 = vdwg.mxu0
    %1450 = vmatprep.subr.bf16.mxu0 %v893
    %1451 = vmatpush1.bf16.msra.mxu0 %v892
    %1452 = vmatprep.subr.bf16.mxu0 %v897
    %1453 = vmatpush1.bf16.msra.mxu0 %v896
    %1454 = vmatprep.subr.bf16.mxu0 %v901
    %1455 = vmatpush1.bf16.msra.mxu0 %v900
    %1456 = vmatprep.subr.bf16.mxu0 %v905
    %1457 = vmatpush1.bf16.msra.mxu0 %v904
    %1458 = vmatprep.subr.bf16.mxu0 %v909
    %1459 = vmatpush1.bf16.msra.mxu0 %v908
    %1460 = vmatprep.subr.bf16.mxu0 %v913
    %1461 = vmatpush1.bf16.msra.mxu0 %v912
    %1462 = vmatprep.subr.bf16.mxu0 %v917
    %1463 = vmatpush1.bf16.msra.mxu0 %v916
    %1464 = vmatprep.subr.bf16.mxu0 %v921
    %1465 = vmatpush1.bf16.msra.mxu0 %v920
    %1466 = vmatprep.subr.bf16.mxu0 %v925
    %1467 = vmatpush1.bf16.msra.mxu0 %v924
    %1468 = vmatprep.subr.bf16.mxu0 %v929
    %1469 = vmatpush1.bf16.msra.mxu0 %v928
    %1470 = vmatprep.subr.bf16.mxu0 %v933
    %1471 = vmatpush1.bf16.msra.mxu0 %v932
    %1472 = vmatprep.subr.bf16.mxu0 %v937
    %1473 = vmatpush1.bf16.msra.mxu0 %v936
    %1474 = vmatprep.subr.bf16.mxu0 %v941
    %1475 = vmatpush1.bf16.msra.mxu0 %v940
    %1476 = vmatprep.subr.bf16.mxu0 %v945
    %1477 = vmatpush1.bf16.msra.mxu0 %v944
    %1478 = vmatprep.subr.bf16.mxu0 %v949
    %1479 = vmatpush1.bf16.msra.mxu0 %v948
    %1480 = vmatprep.subr.bf16.mxu0 %v953
    %1481 = vmatpush1.bf16.msra.mxu0 %v952
    %1482 = vmatprep.mubr.bf16.mxu0 %v290
    %1483 = vmatmul.mubr.bf16.gmra.mrb[0].mxu0 %v289
    %v1484 = vpop.f32.mrb[0].mxu0
    %v1485 = vadd.f32 %v269, %v1484
    %v1486 = vpop.f32.mrb[0].mxu0
    %v1487 = vadd.f32 %v273, %v1486
    %v1488 = vpop.f32.mrb[0].mxu0
    %v1489 = vpop.f32.mrb[0].mxu0
    %1490 = vdwg.mxu0
    %1491 = vmatprep.subr.bf16.mxu0 %v957
    %1492 = vmatpush1.bf16.msra.mxu0 %v956
    %1493 = vmatprep.subr.bf16.mxu0 %v961
    %1494 = vmatpush1.bf16.msra.mxu0 %v960
    %1495 = vmatprep.subr.bf16.mxu0 %v965
    %1496 = vmatpush1.bf16.msra.mxu0 %v964
    %1497 = vmatprep.subr.bf16.mxu0 %v969
    %1498 = vmatpush1.bf16.msra.mxu0 %v968
    %1499 = vmatprep.subr.bf16.mxu0 %v973
    %1500 = vmatpush1.bf16.msra.mxu0 %v972
    %1501 = vmatprep.subr.bf16.mxu0 %v977
    %1502 = vmatpush1.bf16.msra.mxu0 %v976
    %1503 = vmatprep.subr.bf16.mxu0 %v981
    %1504 = vmatpush1.bf16.msra.mxu0 %v980
    %1505 = vmatprep.subr.bf16.mxu0 %v985
    %1506 = vmatpush1.bf16.msra.mxu0 %v984
    %1507 = vmatprep.subr.bf16.mxu0 %v989
    %1508 = vmatpush1.bf16.msra.mxu0 %v988
    %1509 = vmatprep.subr.bf16.mxu0 %v993
    %1510 = vmatpush1.bf16.msra.mxu0 %v992
    %1511 = vmatprep.subr.bf16.mxu0 %v997
    %1512 = vmatpush1.bf16.msra.mxu0 %v996
    %1513 = vmatprep.subr.bf16.mxu0 %v1001
    %1514 = vmatpush1.bf16.msra.mxu0 %v1000
    %1515 = vmatprep.subr.bf16.mxu0 %v1005
    %1516 = vmatpush1.bf16.msra.mxu0 %v1004
    %1517 = vmatprep.subr.bf16.mxu0 %v1009
    %1518 = vmatpush1.bf16.msra.mxu0 %v1008
    %1519 = vmatprep.subr.bf16.mxu0 %v1013
    %1520 = vmatpush1.bf16.msra.mxu0 %v1012
    %1521 = vmatprep.subr.bf16.mxu0 %v1017
    %1522 = vmatpush1.bf16.msra.mxu0 %v1016
    %1523 = vmatprep.mubr.bf16.mxu0 %v292
    %1524 = vmatmul.mubr.bf16.gmra.mrb[0].mxu0 %v291
    %v1525 = vpop.f32.mrb[0].mxu0
    %v1526 = vadd.f32 %v1485, %v1525
    %v1527 = vpop.f32.mrb[0].mxu0
    %v1528 = vadd.f32 %v1487, %v1527
    %v1529 = vpop.f32.mrb[0].mxu0
    %v1530 = vpop.f32.mrb[0].mxu0
    %1531 = vdwg.mxu0
    %1532 = vmatprep.subr.bf16.mxu0 %v1021
    %1533 = vmatpush1.bf16.msra.mxu0 %v1020
    %1534 = vmatprep.subr.bf16.mxu0 %v1025
    %1535 = vmatpush1.bf16.msra.mxu0 %v1024
    %1536 = vmatprep.subr.bf16.mxu0 %v1029
    %1537 = vmatpush1.bf16.msra.mxu0 %v1028
    %1538 = vmatprep.subr.bf16.mxu0 %v1033
    %1539 = vmatpush1.bf16.msra.mxu0 %v1032
    %1540 = vmatprep.subr.bf16.mxu0 %v1037
    %1541 = vmatpush1.bf16.msra.mxu0 %v1036
    %1542 = vmatprep.subr.bf16.mxu0 %v1041
    %1543 = vmatpush1.bf16.msra.mxu0 %v1040
    %1544 = vmatprep.subr.bf16.mxu0 %v1045
    %1545 = vmatpush1.bf16.msra.mxu0 %v1044
    %1546 = vmatprep.subr.bf16.mxu0 %v1049
    %1547 = vmatpush1.bf16.msra.mxu0 %v1048
    %1548 = vmatprep.subr.bf16.mxu0 %v1053
    %1549 = vmatpush1.bf16.msra.mxu0 %v1052
    %1550 = vmatprep.subr.bf16.mxu0 %v1057
    %1551 = vmatpush1.bf16.msra.mxu0 %v1056
    %1552 = vmatprep.subr.bf16.mxu0 %v1061
    %1553 = vmatpush1.bf16.msra.mxu0 %v1060
    %1554 = vmatprep.subr.bf16.mxu0 %v1065
    %1555 = vmatpush1.bf16.msra.mxu0 %v1064
    %1556 = vmatprep.subr.bf16.mxu0 %v1069
    %1557 = vmatpush1.bf16.msra.mxu0 %v1068
    %1558 = vmatprep.subr.bf16.mxu0 %v1073
    %1559 = vmatpush1.bf16.msra.mxu0 %v1072
    %1560 = vmatprep.subr.bf16.mxu0 %v1077
    %1561 = vmatpush1.bf16.msra.mxu0 %v1076
    %1562 = vmatprep.subr.bf16.mxu0 %v1081
    %1563 = vmatpush1.bf16.msra.mxu0 %v1080
    %1564 = vmatprep.mubr.bf16.mxu0 %v294
    %1565 = vmatmul.mubr.bf16.gmra.mrb[0].mxu0 %v293
    %v1566 = vpop.f32.mrb[0].mxu0
    %v1567 = vadd.f32 %v1526, %v1566
    %v1568 = vpop.f32.mrb[0].mxu0
    %v1569 = vadd.f32 %v1528, %v1568
    %v1570 = vpop.f32.mrb[0].mxu0
    %v1571 = vpop.f32.mrb[0].mxu0
    %1572 = vdwg.mxu0
    %1573 = vmatprep.subr.bf16.mxu0 %v1085
    %1574 = vmatpush1.bf16.msra.mxu0 %v1084
    %1575 = vmatprep.subr.bf16.mxu0 0
    %1576 = vmatpush1.bf16.msra.mxu0 0
    %1577 = vmatprep.subr.bf16.mxu0 0
    %1578 = vmatpush1.bf16.msra.mxu0 0
    %1579 = vmatprep.subr.bf16.mxu0 0
    %1580 = vmatpush1.bf16.msra.mxu0 0
    %1581 = vmatprep.subr.bf16.mxu0 0
    %1582 = vmatpush1.bf16.msra.mxu0 0
    %1583 = vmatprep.subr.bf16.mxu0 0
    %1584 = vmatpush1.bf16.msra.mxu0 0
    %1585 = vmatprep.subr.bf16.mxu0 0
    %1586 = vmatpush1.bf16.msra.mxu0 0
    %1587 = vmatprep.subr.bf16.mxu0 0
    %1588 = vmatpush1.bf16.msra.mxu0 0
    %1589 = vmatprep.subr.bf16.mxu0 0
    %1590 = vmatpush1.bf16.msra.mxu0 0
    %1591 = vmatprep.subr.bf16.mxu0 0
    %1592 = vmatpush1.bf16.msra.mxu0 0
    %1593 = vmatprep.subr.bf16.mxu0 0
    %1594 = vmatpush1.bf16.msra.mxu0 0
    %1595 = vmatprep.subr.bf16.mxu0 0
    %1596 = vmatpush1.bf16.msra.mxu0 0
    %1597 = vmatprep.subr.bf16.mxu0 0
    %1598 = vmatpush1.bf16.msra.mxu0 0
    %1599 = vmatprep.subr.bf16.mxu0 0
    %1600 = vmatpush1.bf16.msra.mxu0 0
    %1601 = vmatprep.subr.bf16.mxu0 0
    %1602 = vmatpush1.bf16.msra.mxu0 0
    %1603 = vmatprep.subr.bf16.mxu0 0
    %1604 = vmatpush1.bf16.msra.mxu0 0
    %1605 = vmatprep.mubr.bf16.mxu0 0
    %1606 = vmatmul.mubr.bf16.gmra.mrb[0].mxu0 %v1284
    %v1607 = vpop.f32.mrb[0].mxu0
    %v1608 = vadd.f32 %v1567, %v1607
    %v1609 = vpop.f32.mrb[0].mxu0
    %v1610 = vadd.f32 %v1569, %v1609
    %v1611 = vpop.f32.mrb[0].mxu0
    %v1612 = vpop.f32.mrb[0].mxu0
    %1613 = vdwg.mxu0
    %v1614 = vmax.f32 %v1444, 0.0
    %v1615 = vmax.f32 %v1446, 0.0
    %v1616 = vmax.f32 %v1608, 0.0
    %v1617 = vmax.f32 %v1610, 0.0
    %v1618 = vpack.c.bf16 %v1614, %v1614
    %v1619 = vpack.c.bf16 %v1615, %v1615
    %v1620 = vpack.c.bf16 %v1616, %v1616
    %v1621 = vpack.c.bf16 %v1617, %v1617
    %v1622 = vld [vmem:[#allocation5] sm:$0xff]
    %v1623 = vld [vmem:[#allocation5 + $0x8] sm:$0xff]
    %v1624 = vld [vmem:[#allocation5 + $0x10] sm:$0xff]
    %v1625 = vld [vmem:[#allocation5 + $0x18] sm:$0xff]
    %v1626 = vld [vmem:[#allocation5 + $0x20] sm:$0xff]
    %v1627 = vld [vmem:[#allocation5 + $0x28] sm:$0xff]
    %v1628 = vld [vmem:[#allocation5 + $0x30] sm:$0xff]
    %v1629 = vld [vmem:[#allocation5 + $0x38] sm:$0xff]
    %v1630 = vld [vmem:[#allocation5 + $0x40] sm:$0xff]
    %v1631 = vld [vmem:[#allocation5 + $0x48] sm:$0xff]
    %v1632 = vld [vmem:[#allocation5 + $0x50] sm:$0xff]
    %v1633 = vld [vmem:[#allocation5 + $0x58] sm:$0xff]
    %v1634 = vld [vmem:[#allocation5 + $0x60] sm:$0xff]
    %v1635 = vld [vmem:[#allocation5 + $0x68] sm:$0xff]
    %v1636 = vld [vmem:[#allocation5 + $0x70] sm:$0xff]
    %v1637 = vld [vmem:[#allocation5 + $0x78] sm:$0xff]
    %v1638 = vld [vmem:[#allocation5 + $0x80] sm:$0xff]
    %v1639 = vld [vmem:[#allocation5 + $0x88] sm:$0xff]
    %v1640 = vld [vmem:[#allocation5 + $0x90] sm:$0xff]
    %v1641 = vld [vmem:[#allocation5 + $0x98] sm:$0xff]
    %v1642 = vld [vmem:[#allocation5 + $0xa0] sm:$0xff]
    %v1643 = vld [vmem:[#allocation5 + $0xa8] sm:$0xff]
    %v1644 = vld [vmem:[#allocation5 + $0xb0] sm:$0xff]
    %v1645 = vld [vmem:[#allocation5 + $0xb8] sm:$0xff]
    %v1646 = vld [vmem:[#allocation5 + $0xc0] sm:$0xff]
    %v1647 = vld [vmem:[#allocation5 + $0xc8] sm:$0xff]
    %v1648 = vld [vmem:[#allocation5 + $0xd0] sm:$0xff]
    %v1649 = vld [vmem:[#allocation5 + $0xd8] sm:$0xff]
    %v1650 = vld [vmem:[#allocation5 + $0xe0] sm:$0xff]
    %v1651 = vld [vmem:[#allocation5 + $0xe8] sm:$0xff]
    %v1652 = vld [vmem:[#allocation5 + $0xf0] sm:$0xff]
    %v1653 = vld [vmem:[#allocation5 + $0xf8] sm:$0xff]
    %v1654 = vld [vmem:[#allocation5 + $0x100] sm:$0xff]
    %v1655 = vld [vmem:[#allocation5 + $0x108] sm:$0xff]
    %v1656 = vld [vmem:[#allocation5 + $0x110] sm:$0xff]
    %v1657 = vld [vmem:[#allocation5 + $0x118] sm:$0xff]
    %v1658 = vld [vmem:[#allocation5 + $0x120] sm:$0xff]
    %v1659 = vld [vmem:[#allocation5 + $0x128] sm:$0xff]
    %v1660 = vld [vmem:[#allocation5 + $0x130] sm:$0xff]
    %v1661 = vld [vmem:[#allocation5 + $0x138] sm:$0xff]
    %v1662 = vld [vmem:[#allocation5 + $0x140] sm:$0xff]
    %v1663 = vld [vmem:[#allocation5 + $0x148] sm:$0xff]
    %v1664 = vld [vmem:[#allocation5 + $0x150] sm:$0xff]
    %v1665 = vld [vmem:[#allocation5 + $0x158] sm:$0xff]
    %v1666 = vld [vmem:[#allocation5 + $0x160] sm:$0xff]
    %v1667 = vld [vmem:[#allocation5 + $0x168] sm:$0xff]
    %v1668 = vld [vmem:[#allocation5 + $0x170] sm:$0xff]
    %v1669 = vld [vmem:[#allocation5 + $0x178] sm:$0xff]
    %v1670 = vld [vmem:[#allocation5 + $0x180] sm:$0xff]
    %v1671 = vld [vmem:[#allocation5 + $0x188] sm:$0xff]
    %v1672 = vld [vmem:[#allocation5 + $0x190] sm:$0xff]
    %v1673 = vld [vmem:[#allocation5 + $0x198] sm:$0xff]
    %v1674 = vld [vmem:[#allocation5 + $0x1a0] sm:$0xff]
    %v1675 = vld [vmem:[#allocation5 + $0x1a8] sm:$0xff]
    %v1676 = vld [vmem:[#allocation5 + $0x1b0] sm:$0xff]
    %v1677 = vld [vmem:[#allocation5 + $0x1b8] sm:$0xff]
    %v1678 = vld [vmem:[#allocation5 + $0x1c0] sm:$0xff]
    %v1679 = vld [vmem:[#allocation5 + $0x1c8] sm:$0xff]
    %v1680 = vld [vmem:[#allocation5 + $0x1d0] sm:$0xff]
    %v1681 = vld [vmem:[#allocation5 + $0x1d8] sm:$0xff]
    %v1682 = vld [vmem:[#allocation5 + $0x1e0] sm:$0xff]
    %v1683 = vld [vmem:[#allocation5 + $0x1e8] sm:$0xff]
    %v1684 = vld [vmem:[#allocation5 + $0x1f0] sm:$0xff]
    %v1685 = vld [vmem:[#allocation5 + $0x1f8] sm:$0xff]
    %v1686 = vld [vmem:[#allocation5 + $0x200] sm:$0xff]
    %v1687 = vld [vmem:[#allocation5 + $0x208] sm:$0xff]
    %v1688 = vld [vmem:[#allocation5 + $0x210] sm:$0xff]
    %v1689 = vld [vmem:[#allocation5 + $0x218] sm:$0xff]
    %v1690 = vld [vmem:[#allocation5 + $0x220] sm:$0xff]
    %v1691 = vld [vmem:[#allocation5 + $0x228] sm:$0xff]
    %v1692 = vld [vmem:[#allocation5 + $0x230] sm:$0xff]
    %v1693 = vld [vmem:[#allocation5 + $0x238] sm:$0xff]
    %v1694 = vld [vmem:[#allocation5 + $0x240] sm:$0xff]
    %v1695 = vld [vmem:[#allocation5 + $0x248] sm:$0xff]
    %v1696 = vld [vmem:[#allocation5 + $0x250] sm:$0xff]
    %v1697 = vld [vmem:[#allocation5 + $0x258] sm:$0xff]
    %v1698 = vld [vmem:[#allocation5 + $0x260] sm:$0xff]
    %v1699 = vld [vmem:[#allocation5 + $0x268] sm:$0xff]
    %v1700 = vld [vmem:[#allocation5 + $0x270] sm:$0xff]
    %v1701 = vld [vmem:[#allocation5 + $0x278] sm:$0xff]
    %v1702 = vld [vmem:[#allocation5 + $0x280] sm:$0xff]
    %v1703 = vld [vmem:[#allocation5 + $0x288] sm:$0xff]
    %v1704 = vld [vmem:[#allocation5 + $0x290] sm:$0xff]
    %v1705 = vld [vmem:[#allocation5 + $0x298] sm:$0xff]
    %v1706 = vld [vmem:[#allocation5 + $0x2a0] sm:$0xff]
    %v1707 = vld [vmem:[#allocation5 + $0x2a8] sm:$0xff]
    %v1708 = vld [vmem:[#allocation5 + $0x2b0] sm:$0xff]
    %v1709 = vld [vmem:[#allocation5 + $0x2b8] sm:$0xff]
    %v1710 = vld [vmem:[#allocation5 + $0x2c0] sm:$0xff]
    %v1711 = vld [vmem:[#allocation5 + $0x2c8] sm:$0xff]
    %v1712 = vld [vmem:[#allocation5 + $0x2d0] sm:$0xff]
    %v1713 = vld [vmem:[#allocation5 + $0x2d8] sm:$0xff]
    %v1714 = vld [vmem:[#allocation5 + $0x2e0] sm:$0xff]
    %v1715 = vld [vmem:[#allocation5 + $0x2e8] sm:$0xff]
    %v1716 = vld [vmem:[#allocation5 + $0x2f0] sm:$0xff]
    %v1717 = vld [vmem:[#allocation5 + $0x2f8] sm:$0xff]
    %v1718 = vld [vmem:[#allocation5 + $0x300] sm:$0xff]
    %v1719 = vld [vmem:[#allocation5 + $0x308] sm:$0xff]
    %v1720 = vld [vmem:[#allocation5 + $0x310] sm:$0xff]
    %v1721 = vld [vmem:[#allocation5 + $0x318] sm:$0xff]
    %v1722 = vld [vmem:[#allocation5 + $0x320] sm:$0xff]
    %v1723 = vld [vmem:[#allocation5 + $0x328] sm:$0xff]
    %v1724 = vld [vmem:[#allocation5 + $0x330] sm:$0xff]
    %v1725 = vld [vmem:[#allocation5 + $0x338] sm:$0xff]
    %v1726 = vld [vmem:[#allocation5 + $0x340] sm:$0xff]
    %v1727 = vld [vmem:[#allocation5 + $0x348] sm:$0xff]
    %v1728 = vld [vmem:[#allocation5 + $0x350] sm:$0xff]
    %v1729 = vld [vmem:[#allocation5 + $0x358] sm:$0xff]
    %v1730 = vld [vmem:[#allocation5 + $0x360] sm:$0xff]
    %v1731 = vld [vmem:[#allocation5 + $0x368] sm:$0xff]
    %v1732 = vld [vmem:[#allocation5 + $0x370] sm:$0xff]
    %v1733 = vld [vmem:[#allocation5 + $0x378] sm:$0xff]
    %v1734 = vld [vmem:[#allocation5 + $0x380] sm:$0xff]
    %v1735 = vld [vmem:[#allocation5 + $0x388] sm:$0xff]
    %v1736 = vld [vmem:[#allocation5 + $0x390] sm:$0xff]
    %v1737 = vld [vmem:[#allocation5 + $0x398] sm:$0xff]
    %v1738 = vld [vmem:[#allocation5 + $0x3a0] sm:$0xff]
    %v1739 = vld [vmem:[#allocation5 + $0x3a8] sm:$0xff]
    %v1740 = vld [vmem:[#allocation5 + $0x3b0] sm:$0xff]
    %v1741 = vld [vmem:[#allocation5 + $0x3b8] sm:$0xff]
    %v1742 = vld [vmem:[#allocation5 + $0x3c0] sm:$0xff]
    %v1743 = vld [vmem:[#allocation5 + $0x3c8] sm:$0xff]
    %v1744 = vld [vmem:[#allocation5 + $0x3d0] sm:$0xff]
    %v1745 = vld [vmem:[#allocation5 + $0x3d8] sm:$0xff]
    %v1746 = vld [vmem:[#allocation5 + $0x3e0] sm:$0xff]
    %v1747 = vld [vmem:[#allocation5 + $0x3e8] sm:$0xff]
    %v1748 = vld [vmem:[#allocation5 + $0x3f0] sm:$0xff]
    %v1749 = vld [vmem:[#allocation5 + $0x3f8] sm:$0xff]
    %v1750 = vld [vmem:[%s4] sm:$0xf]
    %v1752 = vlaneseq
    %v1753 = vshrl.u32 %v1752, 7
    %v1754 = vsub.s32 0, %v1753
    %v1755 = vrot.slane %v1750, %v1754
    %v1756 = vlaneseq
    %v1757 = vshrl.u32 %v1756, 7
    %v1758 = vsub.s32 1, %v1757
    %v1759 = vrot.slane %v1750, %v1758
    %v1760 = vlaneseq
    %v1761 = vshrl.u32 %v1760, 7
    %v1762 = vsub.s32 2, %v1761
    %v1763 = vrot.slane %v1750, %v1762
    %v1764 = vlaneseq
    %v1765 = vshrl.u32 %v1764, 7
    %v1766 = vsub.s32 3, %v1765
    %v1767 = vrot.slane %v1750, %v1766
    %v1900 = vunpack.c.l.b16 %v1622
    %v1901 = vunpack.c.h.b16 %v1622
    %v1902 = vunpack.c.l.b16 %v1623
    %v1903 = vunpack.c.h.b16 %v1623
    %v1904 = vunpack.c.l.b16 %v1624
    %v1905 = vunpack.c.h.b16 %v1624
    %v1906 = vunpack.c.l.b16 %v1625
    %v1907 = vunpack.c.h.b16 %v1625
    %v1908 = vunpack.c.l.b16 %v1626
    %v1909 = vunpack.c.h.b16 %v1626
    %v1910 = vunpack.c.l.b16 %v1627
    %v1911 = vunpack.c.h.b16 %v1627
    %v1912 = vunpack.c.l.b16 %v1628
    %v1913 = vunpack.c.h.b16 %v1628
    %v1914 = vunpack.c.l.b16 %v1629
    %v1915 = vunpack.c.h.b16 %v1629
    %v1916 = vunpack.c.l.b16 %v1630
    %v1917 = vunpack.c.h.b16 %v1630
    %v1918 = vunpack.c.l.b16 %v1631
    %v1919 = vunpack.c.h.b16 %v1631
    %v1920 = vunpack.c.l.b16 %v1632
    %v1921 = vunpack.c.h.b16 %v1632
    %v1922 = vunpack.c.l.b16 %v1633
    %v1923 = vunpack.c.h.b16 %v1633
    %v1924 = vunpack.c.l.b16 %v1634
    %v1925 = vunpack.c.h.b16 %v1634
    %v1926 = vunpack.c.l.b16 %v1635
    %v1927 = vunpack.c.h.b16 %v1635
    %v1928 = vunpack.c.l.b16 %v1636
    %v1929 = vunpack.c.h.b16 %v1636
    %v1930 = vunpack.c.l.b16 %v1637
    %v1931 = vunpack.c.h.b16 %v1637
    %v1932 = vunpack.c.l.b16 %v1638
    %v1933 = vunpack.c.h.b16 %v1638
    %v1934 = vunpack.c.l.b16 %v1639
    %v1935 = vunpack.c.h.b16 %v1639
    %v1936 = vunpack.c.l.b16 %v1640
    %v1937 = vunpack.c.h.b16 %v1640
    %v1938 = vunpack.c.l.b16 %v1641
    %v1939 = vunpack.c.h.b16 %v1641
    %v1940 = vunpack.c.l.b16 %v1642
    %v1941 = vunpack.c.h.b16 %v1642
    %v1942 = vunpack.c.l.b16 %v1643
    %v1943 = vunpack.c.h.b16 %v1643
    %v1944 = vunpack.c.l.b16 %v1644
    %v1945 = vunpack.c.h.b16 %v1644
    %v1946 = vunpack.c.l.b16 %v1645
    %v1947 = vunpack.c.h.b16 %v1645
    %v1948 = vunpack.c.l.b16 %v1646
    %v1949 = vunpack.c.h.b16 %v1646
    %v1950 = vunpack.c.l.b16 %v1647
    %v1951 = vunpack.c.h.b16 %v1647
    %v1952 = vunpack.c.l.b16 %v1648
    %v1953 = vunpack.c.h.b16 %v1648
    %v1954 = vunpack.c.l.b16 %v1649
    %v1955 = vunpack.c.h.b16 %v1649
    %v1956 = vunpack.c.l.b16 %v1650
    %v1957 = vunpack.c.h.b16 %v1650
    %v1958 = vunpack.c.l.b16 %v1651
    %v1959 = vunpack.c.h.b16 %v1651
    %v1960 = vunpack.c.l.b16 %v1652
    %v1961 = vunpack.c.h.b16 %v1652
    %v1962 = vunpack.c.l.b16 %v1653
    %v1963 = vunpack.c.h.b16 %v1653
    %v1964 = vunpack.c.l.b16 %v1654
    %v1965 = vunpack.c.h.b16 %v1654
    %v1966 = vunpack.c.l.b16 %v1655
    %v1967 = vunpack.c.h.b16 %v1655
    %v1968 = vunpack.c.l.b16 %v1656
    %v1969 = vunpack.c.h.b16 %v1656
    %v1970 = vunpack.c.l.b16 %v1657
    %v1971 = vunpack.c.h.b16 %v1657
    %v1972 = vunpack.c.l.b16 %v1658
    %v1973 = vunpack.c.h.b16 %v1658
    %v1974 = vunpack.c.l.b16 %v1659
    %v1975 = vunpack.c.h.b16 %v1659
    %v1976 = vunpack.c.l.b16 %v1660
    %v1977 = vunpack.c.h.b16 %v1660
    %v1978 = vunpack.c.l.b16 %v1661
    %v1979 = vunpack.c.h.b16 %v1661
    %v1980 = vunpack.c.l.b16 %v1662
    %v1981 = vunpack.c.h.b16 %v1662
    %v1982 = vunpack.c.l.b16 %v1663
    %v1983 = vunpack.c.h.b16 %v1663
    %v1984 = vunpack.c.l.b16 %v1664
    %v1985 = vunpack.c.h.b16 %v1664
    %v1986 = vunpack.c.l.b16 %v1665
    %v1987 = vunpack.c.h.b16 %v1665
    %v1988 = vunpack.c.l.b16 %v1666
    %v1989 = vunpack.c.h.b16 %v1666
    %v1990 = vunpack.c.l.b16 %v1667
    %v1991 = vunpack.c.h.b16 %v1667
    %v1992 = vunpack.c.l.b16 %v1668
    %v1993 = vunpack.c.h.b16 %v1668
    %v1994 = vunpack.c.l.b16 %v1669
    %v1995 = vunpack.c.h.b16 %v1669
    %v1996 = vunpack.c.l.b16 %v1670
    %v1997 = vunpack.c.h.b16 %v1670
    %v1998 = vunpack.c.l.b16 %v1671
    %v1999 = vunpack.c.h.b16 %v1671
    %v2000 = vunpack.c.l.b16 %v1672
    %v2001 = vunpack.c.h.b16 %v1672
    %v2002 = vunpack.c.l.b16 %v1673
    %v2003 = vunpack.c.h.b16 %v1673
    %v2004 = vunpack.c.l.b16 %v1674
    %v2005 = vunpack.c.h.b16 %v1674
    %v2006 = vunpack.c.l.b16 %v1675
    %v2007 = vunpack.c.h.b16 %v1675
    %v2008 = vunpack.c.l.b16 %v1676
    %v2009 = vunpack.c.h.b16 %v1676
    %v2010 = vunpack.c.l.b16 %v1677
    %v2011 = vunpack.c.h.b16 %v1677
    %v2012 = vunpack.c.l.b16 %v1678
    %v2013 = vunpack.c.h.b16 %v1678
    %v2014 = vunpack.c.l.b16 %v1679
    %v2015 = vunpack.c.h.b16 %v1679
    %v2016 = vunpack.c.l.b16 %v1680
    %v2017 = vunpack.c.h.b16 %v1680
    %v2018 = vunpack.c.l.b16 %v1681
    %v2019 = vunpack.c.h.b16 %v1681
    %v2020 = vunpack.c.l.b16 %v1682
    %v2021 = vunpack.c.h.b16 %v1682
    %v2022 = vunpack.c.l.b16 %v1683
    %v2023 = vunpack.c.h.b16 %v1683
    %v2024 = vunpack.c.l.b16 %v1684
    %v2025 = vunpack.c.h.b16 %v1684
    %v2026 = vunpack.c.l.b16 %v1685
    %v2027 = vunpack.c.h.b16 %v1685
    %v2028 = vunpack.c.l.b16 %v1686
    %v2029 = vunpack.c.h.b16 %v1686
    %v2030 = vunpack.c.l.b16 %v1687
    %v2031 = vunpack.c.h.b16 %v1687
    %v2032 = vunpack.c.l.b16 %v1688
    %v2033 = vunpack.c.h.b16 %v1688
    %v2034 = vunpack.c.l.b16 %v1689
    %v2035 = vunpack.c.h.b16 %v1689
    %v2036 = vunpack.c.l.b16 %v1690
    %v2037 = vunpack.c.h.b16 %v1690
    %v2038 = vunpack.c.l.b16 %v1691
    %v2039 = vunpack.c.h.b16 %v1691
    %v2040 = vunpack.c.l.b16 %v1692
    %v2041 = vunpack.c.h.b16 %v1692
    %v2042 = vunpack.c.l.b16 %v1693
    %v2043 = vunpack.c.h.b16 %v1693
    %v2044 = vunpack.c.l.b16 %v1694
    %v2045 = vunpack.c.h.b16 %v1694
    %v2046 = vunpack.c.l.b16 %v1695
    %v2047 = vunpack.c.h.b16 %v1695
    %v2048 = vunpack.c.l.b16 %v1696
    %v2049 = vunpack.c.h.b16 %v1696
    %v2050 = vunpack.c.l.b16 %v1697
    %v2051 = vunpack.c.h.b16 %v1697
    %v2052 = vunpack.c.l.b16 %v1698
    %v2053 = vunpack.c.h.b16 %v1698
    %v2054 = vunpack.c.l.b16 %v1699
    %v2055 = vunpack.c.h.b16 %v1699
    %v2056 = vunpack.c.l.b16 %v1700
    %v2057 = vunpack.c.h.b16 %v1700
    %v2058 = vunpack.c.l.b16 %v1701
    %v2059 = vunpack.c.h.b16 %v1701
    %v2060 = vunpack.c.l.b16 %v1702
    %v2061 = vunpack.c.h.b16 %v1702
    %v2062 = vunpack.c.l.b16 %v1703
    %v2063 = vunpack.c.h.b16 %v1703
    %v2064 = vunpack.c.l.b16 %v1704
    %v2065 = vunpack.c.h.b16 %v1704
    %v2066 = vunpack.c.l.b16 %v1705
    %v2067 = vunpack.c.h.b16 %v1705
    %v2068 = vunpack.c.l.b16 %v1706
    %v2069 = vunpack.c.h.b16 %v1706
    %v2070 = vunpack.c.l.b16 %v1707
    %v2071 = vunpack.c.h.b16 %v1707
    %v2072 = vunpack.c.l.b16 %v1708
    %v2073 = vunpack.c.h.b16 %v1708
    %v2074 = vunpack.c.l.b16 %v1709
    %v2075 = vunpack.c.h.b16 %v1709
    %v2076 = vunpack.c.l.b16 %v1710
    %v2077 = vunpack.c.h.b16 %v1710
    %v2078 = vunpack.c.l.b16 %v1711
    %v2079 = vunpack.c.h.b16 %v1711
    %v2080 = vunpack.c.l.b16 %v1712
    %v2081 = vunpack.c.h.b16 %v1712
    %v2082 = vunpack.c.l.b16 %v1713
    %v2083 = vunpack.c.h.b16 %v1713
    %v2084 = vunpack.c.l.b16 %v1714
    %v2085 = vunpack.c.h.b16 %v1714
    %v2086 = vunpack.c.l.b16 %v1715
    %v2087 = vunpack.c.h.b16 %v1715
    %v2088 = vunpack.c.l.b16 %v1716
    %v2089 = vunpack.c.h.b16 %v1716
    %v2090 = vunpack.c.l.b16 %v1717
    %v2091 = vunpack.c.h.b16 %v1717
    %v2092 = vunpack.c.l.b16 %v1718
    %v2093 = vunpack.c.h.b16 %v1718
    %v2094 = vunpack.c.l.b16 %v1719
    %v2095 = vunpack.c.h.b16 %v1719
    %v2096 = vunpack.c.l.b16 %v1720
    %v2097 = vunpack.c.h.b16 %v1720
    %v2098 = vunpack.c.l.b16 %v1721
    %v2099 = vunpack.c.h.b16 %v1721
    %v2100 = vunpack.c.l.b16 %v1722
    %v2101 = vunpack.c.h.b16 %v1722
    %v2102 = vunpack.c.l.b16 %v1723
    %v2103 = vunpack.c.h.b16 %v1723
    %v2104 = vunpack.c.l.b16 %v1724
    %v2105 = vunpack.c.h.b16 %v1724
    %v2106 = vunpack.c.l.b16 %v1725
    %v2107 = vunpack.c.h.b16 %v1725
    %v2108 = vunpack.c.l.b16 %v1726
    %v2109 = vunpack.c.h.b16 %v1726
    %v2110 = vunpack.c.l.b16 %v1727
    %v2111 = vunpack.c.h.b16 %v1727
    %v2112 = vunpack.c.l.b16 %v1728
    %v2113 = vunpack.c.h.b16 %v1728
    %v2114 = vunpack.c.l.b16 %v1729
    %v2115 = vunpack.c.h.b16 %v1729
    %v2116 = vunpack.c.l.b16 %v1730
    %v2117 = vunpack.c.h.b16 %v1730
    %v2118 = vunpack.c.l.b16 %v1731
    %v2119 = vunpack.c.h.b16 %v1731
    %v2120 = vunpack.c.l.b16 %v1732
    %v2121 = vunpack.c.h.b16 %v1732
    %v2122 = vunpack.c.l.b16 %v1733
    %v2123 = vunpack.c.h.b16 %v1733
    %v2124 = vunpack.c.l.b16 %v1734
    %v2125 = vunpack.c.h.b16 %v1734
    %v2126 = vunpack.c.l.b16 %v1735
    %v2127 = vunpack.c.h.b16 %v1735
    %v2128 = vunpack.c.l.b16 %v1736
    %v2129 = vunpack.c.h.b16 %v1736
    %v2130 = vunpack.c.l.b16 %v1737
    %v2131 = vunpack.c.h.b16 %v1737
    %v2132 = vunpack.c.l.b16 %v1738
    %v2133 = vunpack.c.h.b16 %v1738
    %v2134 = vunpack.c.l.b16 %v1739
    %v2135 = vunpack.c.h.b16 %v1739
    %v2136 = vunpack.c.l.b16 %v1740
    %v2137 = vunpack.c.h.b16 %v1740
    %v2138 = vunpack.c.l.b16 %v1741
    %v2139 = vunpack.c.h.b16 %v1741
    %v2140 = vunpack.c.l.b16 %v1742
    %v2141 = vunpack.c.h.b16 %v1742
    %v2142 = vunpack.c.l.b16 %v1743
    %v2143 = vunpack.c.h.b16 %v1743
    %v2144 = vunpack.c.l.b16 %v1744
    %v2145 = vunpack.c.h.b16 %v1744
    %v2146 = vunpack.c.l.b16 %v1745
    %v2147 = vunpack.c.h.b16 %v1745
    %v2148 = vunpack.c.l.b16 %v1746
    %v2149 = vunpack.c.h.b16 %v1746
    %v2150 = vunpack.c.l.b16 %v1747
    %v2151 = vunpack.c.h.b16 %v1747
    %v2152 = vunpack.c.l.b16 %v1748
    %v2153 = vunpack.c.h.b16 %v1748
    %v2154 = vunpack.c.l.b16 %v1749
    %v2155 = vunpack.c.h.b16 %v1749
    %v2156 = vpack.c.b16 %v1904, %v1900
    %v2157 = vpack.c.b16 %v1905, %v1901
    %v2158 = vpack.c.b16 %v1906, %v1902
    %v2159 = vpack.c.b16 %v1907, %v1903
    %v2160 = vpack.c.b16 %v1912, %v1908
    %v2161 = vpack.c.b16 %v1913, %v1909
    %v2162 = vpack.c.b16 %v1914, %v1910
    %v2163 = vpack.c.b16 %v1915, %v1911
    %v2164 = vpack.c.b16 %v1920, %v1916
    %v2165 = vpack.c.b16 %v1921, %v1917
    %v2166 = vpack.c.b16 %v1922, %v1918
    %v2167 = vpack.c.b16 %v1923, %v1919
    %v2168 = vpack.c.b16 %v1928, %v1924
    %v2169 = vpack.c.b16 %v1929, %v1925
    %v2170 = vpack.c.b16 %v1930, %v1926
    %v2171 = vpack.c.b16 %v1931, %v1927
    %v2172 = vpack.c.b16 %v1936, %v1932
    %v2173 = vpack.c.b16 %v1937, %v1933
    %v2174 = vpack.c.b16 %v1938, %v1934
    %v2175 = vpack.c.b16 %v1939, %v1935
    %v2176 = vpack.c.b16 %v1944, %v1940
    %v2177 = vpack.c.b16 %v1945, %v1941
    %v2178 = vpack.c.b16 %v1946, %v1942
    %v2179 = vpack.c.b16 %v1947, %v1943
    %v2180 = vpack.c.b16 %v1952, %v1948
    %v2181 = vpack.c.b16 %v1953, %v1949
    %v2182 = vpack.c.b16 %v1954, %v1950
    %v2183 = vpack.c.b16 %v1955, %v1951
    %v2184 = vpack.c.b16 %v1960, %v1956
    %v2185 = vpack.c.b16 %v1961, %v1957
    %v2186 = vpack.c.b16 %v1962, %v1958
    %v2187 = vpack.c.b16 %v1963, %v1959
    %v2188 = vpack.c.b16 %v1968, %v1964
    %v2189 = vpack.c.b16 %v1969, %v1965
    %v2190 = vpack.c.b16 %v1970, %v1966
    %v2191 = vpack.c.b16 %v1971, %v1967
    %v2192 = vpack.c.b16 %v1976, %v1972
    %v2193 = vpack.c.b16 %v1977, %v1973
    %v2194 = vpack.c.b16 %v1978, %v1974
    %v2195 = vpack.c.b16 %v1979, %v1975
    %v2196 = vpack.c.b16 %v1984, %v1980
    %v2197 = vpack.c.b16 %v1985, %v1981
    %v2198 = vpack.c.b16 %v1986, %v1982
    %v2199 = vpack.c.b16 %v1987, %v1983
    %v2200 = vpack.c.b16 %v1992, %v1988
    %v2201 = vpack.c.b16 %v1993, %v1989
    %v2202 = vpack.c.b16 %v1994, %v1990
    %v2203 = vpack.c.b16 %v1995, %v1991
    %v2204 = vpack.c.b16 %v2000, %v1996
    %v2205 = vpack.c.b16 %v2001, %v1997
    %v2206 = vpack.c.b16 %v2002, %v1998
    %v2207 = vpack.c.b16 %v2003, %v1999
    %v2208 = vpack.c.b16 %v2008, %v2004
    %v2209 = vpack.c.b16 %v2009, %v2005
    %v2210 = vpack.c.b16 %v2010, %v2006
    %v2211 = vpack.c.b16 %v2011, %v2007
    %v2212 = vpack.c.b16 %v2016, %v2012
    %v2213 = vpack.c.b16 %v2017, %v2013
    %v2214 = vpack.c.b16 %v2018, %v2014
    %v2215 = vpack.c.b16 %v2019, %v2015
    %v2216 = vpack.c.b16 %v2024, %v2020
    %v2217 = vpack.c.b16 %v2025, %v2021
    %v2218 = vpack.c.b16 %v2026, %v2022
    %v2219 = vpack.c.b16 %v2027, %v2023
    %v2220 = vpack.c.b16 %v2032, %v2028
    %v2221 = vpack.c.b16 %v2033, %v2029
    %v2222 = vpack.c.b16 %v2034, %v2030
    %v2223 = vpack.c.b16 %v2035, %v2031
    %v2224 = vpack.c.b16 %v2040, %v2036
    %v2225 = vpack.c.b16 %v2041, %v2037
    %v2226 = vpack.c.b16 %v2042, %v2038
    %v2227 = vpack.c.b16 %v2043, %v2039
    %v2228 = vpack.c.b16 %v2048, %v2044
    %v2229 = vpack.c.b16 %v2049, %v2045
    %v2230 = vpack.c.b16 %v2050, %v2046
    %v2231 = vpack.c.b16 %v2051, %v2047
    %v2232 = vpack.c.b16 %v2056, %v2052
    %v2233 = vpack.c.b16 %v2057, %v2053
    %v2234 = vpack.c.b16 %v2058, %v2054
    %v2235 = vpack.c.b16 %v2059, %v2055
    %v2236 = vpack.c.b16 %v2064, %v2060
    %v2237 = vpack.c.b16 %v2065, %v2061
    %v2238 = vpack.c.b16 %v2066, %v2062
    %v2239 = vpack.c.b16 %v2067, %v2063
    %v2240 = vpack.c.b16 %v2072, %v2068
    %v2241 = vpack.c.b16 %v2073, %v2069
    %v2242 = vpack.c.b16 %v2074, %v2070
    %v2243 = vpack.c.b16 %v2075, %v2071
    %v2244 = vpack.c.b16 %v2080, %v2076
    %v2245 = vpack.c.b16 %v2081, %v2077
    %v2246 = vpack.c.b16 %v2082, %v2078
    %v2247 = vpack.c.b16 %v2083, %v2079
    %v2248 = vpack.c.b16 %v2088, %v2084
    %v2249 = vpack.c.b16 %v2089, %v2085
    %v2250 = vpack.c.b16 %v2090, %v2086
    %v2251 = vpack.c.b16 %v2091, %v2087
    %v2252 = vpack.c.b16 %v2096, %v2092
    %v2253 = vpack.c.b16 %v2097, %v2093
    %v2254 = vpack.c.b16 %v2098, %v2094
    %v2255 = vpack.c.b16 %v2099, %v2095
    %v2256 = vpack.c.b16 %v2104, %v2100
    %v2257 = vpack.c.b16 %v2105, %v2101
    %v2258 = vpack.c.b16 %v2106, %v2102
    %v2259 = vpack.c.b16 %v2107, %v2103
    %v2260 = vpack.c.b16 %v2112, %v2108
    %v2261 = vpack.c.b16 %v2113, %v2109
    %v2262 = vpack.c.b16 %v2114, %v2110
    %v2263 = vpack.c.b16 %v2115, %v2111
    %v2264 = vpack.c.b16 %v2120, %v2116
    %v2265 = vpack.c.b16 %v2121, %v2117
    %v2266 = vpack.c.b16 %v2122, %v2118
    %v2267 = vpack.c.b16 %v2123, %v2119
    %v2268 = vpack.c.b16 %v2128, %v2124
    %v2269 = vpack.c.b16 %v2129, %v2125
    %v2270 = vpack.c.b16 %v2130, %v2126
    %v2271 = vpack.c.b16 %v2131, %v2127
    %v2272 = vpack.c.b16 %v2136, %v2132
    %v2273 = vpack.c.b16 %v2137, %v2133
    %v2274 = vpack.c.b16 %v2138, %v2134
    %v2275 = vpack.c.b16 %v2139, %v2135
    %v2276 = vpack.c.b16 %v2144, %v2140
    %v2277 = vpack.c.b16 %v2145, %v2141
    %v2278 = vpack.c.b16 %v2146, %v2142
    %v2279 = vpack.c.b16 %v2147, %v2143
    %v2280 = vpack.c.b16 %v2152, %v2148
    %v2281 = vpack.c.b16 %v2153, %v2149
    %v2282 = vpack.c.b16 %v2154, %v2150
    %v2283 = vpack.c.b16 %v2155, %v2151
    %2412 = vmatprep.subr.bf16.mxu0 %v2157
    %2413 = vmatpush1.bf16.msra.mxu0 %v2156
    %2414 = vmatprep.subr.bf16.mxu0 %v2161
    %2415 = vmatpush1.bf16.msra.mxu0 %v2160
    %2416 = vmatprep.subr.bf16.mxu0 %v2165
    %2417 = vmatpush1.bf16.msra.mxu0 %v2164
    %2418 = vmatprep.subr.bf16.mxu0 %v2169
    %2419 = vmatpush1.bf16.msra.mxu0 %v2168
    %2420 = vmatprep.subr.bf16.mxu0 %v2173
    %2421 = vmatpush1.bf16.msra.mxu0 %v2172
    %2422 = vmatprep.subr.bf16.mxu0 %v2177
    %2423 = vmatpush1.bf16.msra.mxu0 %v2176
    %2424 = vmatprep.subr.bf16.mxu0 %v2181
    %2425 = vmatpush1.bf16.msra.mxu0 %v2180
    %2426 = vmatprep.subr.bf16.mxu0 %v2185
    %2427 = vmatpush1.bf16.msra.mxu0 %v2184
    %2428 = vmatprep.subr.bf16.mxu0 %v2189
    %2429 = vmatpush1.bf16.msra.mxu0 %v2188
    %2430 = vmatprep.subr.bf16.mxu0 %v2193
    %2431 = vmatpush1.bf16.msra.mxu0 %v2192
    %2432 = vmatprep.subr.bf16.mxu0 %v2197
    %2433 = vmatpush1.bf16.msra.mxu0 %v2196
    %2434 = vmatprep.subr.bf16.mxu0 %v2201
    %2435 = vmatpush1.bf16.msra.mxu0 %v2200
    %2436 = vmatprep.subr.bf16.mxu0 %v2205
    %2437 = vmatpush1.bf16.msra.mxu0 %v2204
    %2438 = vmatprep.subr.bf16.mxu0 %v2209
    %2439 = vmatpush1.bf16.msra.mxu0 %v2208
    %2440 = vmatprep.subr.bf16.mxu0 %v2213
    %2441 = vmatpush1.bf16.msra.mxu0 %v2212
    %2442 = vmatprep.subr.bf16.mxu0 %v2217
    %2443 = vmatpush1.bf16.msra.mxu0 %v2216
    %2444 = vmatprep.mubr.bf16.mxu0 %v1619
    %2445 = vmatmul.mubr.bf16.gmra.mrb[0].mxu0 %v1618
    %v2446 = vpop.f32.mrb[0].mxu0
    %v2447 = vadd.f32 %v1755, %v2446
    %v2448 = vpop.f32.mrb[0].mxu0
    %v2449 = vadd.f32 %v1759, %v2448
    %v2450 = vpop.f32.mrb[0].mxu0
    %v2451 = vpop.f32.mrb[0].mxu0
    %2452 = vdwg.mxu0
    %2453 = vmatprep.subr.bf16.mxu0 %v2221
    %2454 = vmatpush1.bf16.msra.mxu0 %v2220
    %2455 = vmatprep.subr.bf16.mxu0 %v2225
    %2456 = vmatpush1.bf16.msra.mxu0 %v2224
    %2457 = vmatprep.subr.bf16.mxu0 %v2229
    %2458 = vmatpush1.bf16.msra.mxu0 %v2228
    %2459 = vmatprep.subr.bf16.mxu0 %v2233
    %2460 = vmatpush1.bf16.msra.mxu0 %v2232
    %2461 = vmatprep.subr.bf16.mxu0 %v2237
    %2462 = vmatpush1.bf16.msra.mxu0 %v2236
    %2463 = vmatprep.subr.bf16.mxu0 %v2241
    %2464 = vmatpush1.bf16.msra.mxu0 %v2240
    %2465 = vmatprep.subr.bf16.mxu0 %v2245
    %2466 = vmatpush1.bf16.msra.mxu0 %v2244
    %2467 = vmatprep.subr.bf16.mxu0 %v2249
    %2468 = vmatpush1.bf16.msra.mxu0 %v2248
    %2469 = vmatprep.subr.bf16.mxu0 %v2253
    %2470 = vmatpush1.bf16.msra.mxu0 %v2252
    %2471 = vmatprep.subr.bf16.mxu0 %v2257
    %2472 = vmatpush1.bf16.msra.mxu0 %v2256
    %2473 = vmatprep.subr.bf16.mxu0 %v2261
    %2474 = vmatpush1.bf16.msra.mxu0 %v2260
    %2475 = vmatprep.subr.bf16.mxu0 %v2265
    %2476 = vmatpush1.bf16.msra.mxu0 %v2264
    %2477 = vmatprep.subr.bf16.mxu0 %v2269
    %2478 = vmatpush1.bf16.msra.mxu0 %v2268
    %2479 = vmatprep.subr.bf16.mxu0 %v2273
    %2480 = vmatpush1.bf16.msra.mxu0 %v2272
    %2481 = vmatprep.subr.bf16.mxu0 %v2277
    %2482 = vmatpush1.bf16.msra.mxu0 %v2276
    %2483 = vmatprep.subr.bf16.mxu0 %v2281
    %2484 = vmatpush1.bf16.msra.mxu0 %v2280
    %2485 = vmatprep.mubr.bf16.mxu0 %v1621
    %2486 = vmatmul.mubr.bf16.gmra.mrb[0].mxu0 %v1620
    %v2487 = vpop.f32.mrb[0].mxu0
    %v2488 = vadd.f32 %v2447, %v2487
    %v2489 = vpop.f32.mrb[0].mxu0
    %v2490 = vadd.f32 %v2449, %v2489
    %v2491 = vpop.f32.mrb[0].mxu0
    %v2492 = vpop.f32.mrb[0].mxu0
    %2493 = vdwg.mxu0
    %2494 = vmatprep.subr.bf16.mxu0 %v2159
    %2495 = vmatpush1.bf16.msra.mxu0 %v2158
    %2496 = vmatprep.subr.bf16.mxu0 %v2163
    %2497 = vmatpush1.bf16.msra.mxu0 %v2162
    %2498 = vmatprep.subr.bf16.mxu0 %v2167
    %2499 = vmatpush1.bf16.msra.mxu0 %v2166
    %2500 = vmatprep.subr.bf16.mxu0 %v2171
    %2501 = vmatpush1.bf16.msra.mxu0 %v2170
    %2502 = vmatprep.subr.bf16.mxu0 %v2175
    %2503 = vmatpush1.bf16.msra.mxu0 %v2174
    %2504 = vmatprep.subr.bf16.mxu0 %v2179
    %2505 = vmatpush1.bf16.msra.mxu0 %v2178
    %2506 = vmatprep.subr.bf16.mxu0 %v2183
    %2507 = vmatpush1.bf16.msra.mxu0 %v2182
    %2508 = vmatprep.subr.bf16.mxu0 %v2187
    %2509 = vmatpush1.bf16.msra.mxu0 %v2186
    %2510 = vmatprep.subr.bf16.mxu0 %v2191
    %2511 = vmatpush1.bf16.msra.mxu0 %v2190
    %2512 = vmatprep.subr.bf16.mxu0 %v2195
    %2513 = vmatpush1.bf16.msra.mxu0 %v2194
    %2514 = vmatprep.subr.bf16.mxu0 %v2199
    %2515 = vmatpush1.bf16.msra.mxu0 %v2198
    %2516 = vmatprep.subr.bf16.mxu0 %v2203
    %2517 = vmatpush1.bf16.msra.mxu0 %v2202
    %2518 = vmatprep.subr.bf16.mxu0 %v2207
    %2519 = vmatpush1.bf16.msra.mxu0 %v2206
    %2520 = vmatprep.subr.bf16.mxu0 %v2211
    %2521 = vmatpush1.bf16.msra.mxu0 %v2210
    %2522 = vmatprep.subr.bf16.mxu0 %v2215
    %2523 = vmatpush1.bf16.msra.mxu0 %v2214
    %2524 = vmatprep.subr.bf16.mxu0 %v2219
    %2525 = vmatpush1.bf16.msra.mxu0 %v2218
    %2526 = vmatprep.mubr.bf16.mxu0 %v1619
    %2527 = vmatmul.mubr.bf16.gmra.mrb[0].mxu0 %v1618
    %v2528 = vpop.f32.mrb[0].mxu0
    %v2529 = vadd.f32 %v1763, %v2528
    %v2530 = vpop.f32.mrb[0].mxu0
    %v2531 = vadd.f32 %v1767, %v2530
    %v2532 = vpop.f32.mrb[0].mxu0
    %v2533 = vpop.f32.mrb[0].mxu0
    %2534 = vdwg.mxu0
    %2535 = vmatprep.subr.bf16.mxu0 %v2223
    %2536 = vmatpush1.bf16.msra.mxu0 %v2222
    %2537 = vmatprep.subr.bf16.mxu0 %v2227
    %2538 = vmatpush1.bf16.msra.mxu0 %v2226
    %2539 = vmatprep.subr.bf16.mxu0 %v2231
    %2540 = vmatpush1.bf16.msra.mxu0 %v2230
    %2541 = vmatprep.subr.bf16.mxu0 %v2235
    %2542 = vmatpush1.bf16.msra.mxu0 %v2234
    %2543 = vmatprep.subr.bf16.mxu0 %v2239
    %2544 = vmatpush1.bf16.msra.mxu0 %v2238
    %2545 = vmatprep.subr.bf16.mxu0 %v2243
    %2546 = vmatpush1.bf16.msra.mxu0 %v2242
    %2547 = vmatprep.subr.bf16.mxu0 %v2247
    %2548 = vmatpush1.bf16.msra.mxu0 %v2246
    %2549 = vmatprep.subr.bf16.mxu0 %v2251
    %2550 = vmatpush1.bf16.msra.mxu0 %v2250
    %2551 = vmatprep.subr.bf16.mxu0 %v2255
    %2552 = vmatpush1.bf16.msra.mxu0 %v2254
    %2553 = vmatprep.subr.bf16.mxu0 %v2259
    %2554 = vmatpush1.bf16.msra.mxu0 %v2258
    %2555 = vmatprep.subr.bf16.mxu0 %v2263
    %2556 = vmatpush1.bf16.msra.mxu0 %v2262
    %2557 = vmatprep.subr.bf16.mxu0 %v2267
    %2558 = vmatpush1.bf16.msra.mxu0 %v2266
    %2559 = vmatprep.subr.bf16.mxu0 %v2271
    %2560 = vmatpush1.bf16.msra.mxu0 %v2270
    %2561 = vmatprep.subr.bf16.mxu0 %v2275
    %2562 = vmatpush1.bf16.msra.mxu0 %v2274
    %2563 = vmatprep.subr.bf16.mxu0 %v2279
    %2564 = vmatpush1.bf16.msra.mxu0 %v2278
    %2565 = vmatprep.subr.bf16.mxu0 %v2283
    %2566 = vmatpush1.bf16.msra.mxu0 %v2282
    %2567 = vmatprep.mubr.bf16.mxu0 %v1621
    %2568 = vmatmul.mubr.bf16.gmra.mrb[0].mxu0 %v1620
    %v2569 = vpop.f32.mrb[0].mxu0
    %v2570 = vadd.f32 %v2529, %v2569
    %v2571 = vpop.f32.mrb[0].mxu0
    %v2572 = vadd.f32 %v2531, %v2571
    %v2573 = vpop.f32.mrb[0].mxu0
    %v2574 = vpop.f32.mrb[0].mxu0
    %2575 = vdwg.mxu0
    %v2576 = vmax.f32 %v2488, 0.0
    %v2577 = vmax.f32 %v2490, 0.0
    %v2578 = vmax.f32 %v2570, 0.0
    %v2579 = vmax.f32 %v2572, 0.0
    %v2580 = vpack.c.bf16 %v2576, %v2576
    %v2581 = vpack.c.bf16 %v2577, %v2577
    %v2582 = vpack.c.bf16 %v2578, %v2578
    %v2583 = vpack.c.bf16 %v2579, %v2579
    %v2584 = vld [vmem:[%s5] sm:$0xf]
    %v2585 = vld [vmem:[%s5 + $0x4] sm:$0xf]
    %v2586 = vld [vmem:[%s5 + $0x8] sm:$0xf]
    %v2587 = vld [vmem:[%s5 + $0xc] sm:$0xf]
    %v2588 = vld [vmem:[%s5 + $0x10] sm:$0xf]
    %v2589 = vld [vmem:[%s5 + $0x14] sm:$0xf]
    %v2590 = vld [vmem:[%s5 + $0x18] sm:$0xf]
    %v2591 = vld [vmem:[%s5 + $0x1c] sm:$0xf]
    %v2592 = vld [vmem:[%s5 + $0x20] sm:$0xf]
    %v2593 = vld [vmem:[%s5 + $0x24] sm:$0xf]
    %v2594 = vld [vmem:[%s5 + $0x28] sm:$0xf]
    %v2595 = vld [vmem:[%s5 + $0x2c] sm:$0xf]
    %v2596 = vld [vmem:[%s5 + $0x30] sm:$0xf]
    %v2597 = vld [vmem:[%s5 + $0x34] sm:$0xf]
    %v2598 = vld [vmem:[%s5 + $0x38] sm:$0xf]
    %v2599 = vld [vmem:[%s5 + $0x3c] sm:$0xf]
    %v2600 = vld [vmem:[%s5 + $0x40] sm:$0xf]
    %v2601 = vld [vmem:[%s5 + $0x44] sm:$0xf]
    %v2602 = vld [vmem:[%s5 + $0x48] sm:$0xf]
    %v2603 = vld [vmem:[%s5 + $0x4c] sm:$0xf]
    %v2604 = vld [vmem:[%s5 + $0x50] sm:$0xf]
    %v2605 = vld [vmem:[%s5 + $0x54] sm:$0xf]
    %v2606 = vld [vmem:[%s5 + $0x58] sm:$0xf]
    %v2607 = vld [vmem:[%s5 + $0x5c] sm:$0xf]
    %v2608 = vld [vmem:[%s5 + $0x60] sm:$0xf]
    %v2609 = vld [vmem:[%s5 + $0x64] sm:$0xf]
    %v2610 = vld [vmem:[%s5 + $0x68] sm:$0xf]
    %v2611 = vld [vmem:[%s5 + $0x6c] sm:$0xf]
    %v2612 = vld [vmem:[%s5 + $0x70] sm:$0xf]
    %v2613 = vld [vmem:[%s5 + $0x74] sm:$0xf]
    %v2614 = vld [vmem:[%s5 + $0x78] sm:$0xf]
    %v2615 = vld [vmem:[%s5 + $0x7c] sm:$0xf]
    %v2616 = vld [vmem:[%s5 + $0x80] sm:$0xf]
    %v2617 = vld [vmem:[%s5 + $0x84] sm:$0xf]
    %v2618 = vld [vmem:[%s5 + $0x88] sm:$0xf]
    %v2619 = vld [vmem:[%s5 + $0x8c] sm:$0xf]
    %v2620 = vld [vmem:[%s5 + $0x90] sm:$0xf]
    %v2621 = vld [vmem:[%s5 + $0x94] sm:$0xf]
    %v2622 = vld [vmem:[%s5 + $0x98] sm:$0xf]
    %v2623 = vld [vmem:[%s5 + $0x9c] sm:$0xf]
    %v2624 = vld [vmem:[%s5 + $0xa0] sm:$0xf]
    %v2625 = vld [vmem:[%s5 + $0xa4] sm:$0xf]
    %v2626 = vld [vmem:[%s5 + $0xa8] sm:$0xf]
    %v2627 = vld [vmem:[%s5 + $0xac] sm:$0xf]
    %v2628 = vld [vmem:[%s5 + $0xb0] sm:$0xf]
    %v2629 = vld [vmem:[%s5 + $0xb4] sm:$0xf]
    %v2630 = vld [vmem:[%s5 + $0xb8] sm:$0xf]
    %v2631 = vld [vmem:[%s5 + $0xbc] sm:$0xf]
    %v2632 = vld [vmem:[%s5 + $0xc0] sm:$0xf]
    %v2633 = vld [vmem:[%s5 + $0xc4] sm:$0xf]
    %v2634 = vld [vmem:[%s5 + $0xc8] sm:$0xf]
    %v2635 = vld [vmem:[%s5 + $0xcc] sm:$0xf]
    %v2636 = vld [vmem:[%s5 + $0xd0] sm:$0xf]
    %v2637 = vld [vmem:[%s5 + $0xd4] sm:$0xf]
    %v2638 = vld [vmem:[%s5 + $0xd8] sm:$0xf]
    %v2639 = vld [vmem:[%s5 + $0xdc] sm:$0xf]
    %v2640 = vld [vmem:[%s5 + $0xe0] sm:$0xf]
    %v2641 = vld [vmem:[%s5 + $0xe4] sm:$0xf]
    %v2642 = vld [vmem:[%s5 + $0xe8] sm:$0xf]
    %v2643 = vld [vmem:[%s5 + $0xec] sm:$0xf]
    %v2644 = vld [vmem:[%s5 + $0xf0] sm:$0xf]
    %v2645 = vld [vmem:[%s5 + $0xf4] sm:$0xf]
    %v2646 = vld [vmem:[%s5 + $0xf8] sm:$0xf]
    %v2647 = vld [vmem:[%s5 + $0xfc] sm:$0xf]
    %v2648 = vld [vmem:[%s6] sm:$0x1]
    %v2650 = vlaneseq
    %v2651 = vshrl.u32 %v2650, 7
    %v2652 = vsub.s32 0, %v2651
    %v2653 = vrot.slane %v2648, %v2652
    %v2719 = vunpack.c.l.b16 %v2584
    %v2720 = vunpack.c.l.b16 %v2585
    %v2721 = vunpack.c.l.b16 %v2586
    %v2722 = vunpack.c.l.b16 %v2587
    %v2723 = vunpack.c.l.b16 %v2588
    %v2724 = vunpack.c.l.b16 %v2589
    %v2725 = vunpack.c.l.b16 %v2590
    %v2726 = vunpack.c.l.b16 %v2591
    %v2727 = vunpack.c.l.b16 %v2592
    %v2728 = vunpack.c.l.b16 %v2593
    %v2729 = vunpack.c.l.b16 %v2594
    %v2730 = vunpack.c.l.b16 %v2595
    %v2731 = vunpack.c.l.b16 %v2596
    %v2732 = vunpack.c.l.b16 %v2597
    %v2733 = vunpack.c.l.b16 %v2598
    %v2734 = vunpack.c.l.b16 %v2599
    %v2735 = vunpack.c.l.b16 %v2600
    %v2736 = vunpack.c.l.b16 %v2601
    %v2737 = vunpack.c.l.b16 %v2602
    %v2738 = vunpack.c.l.b16 %v2603
    %v2739 = vunpack.c.l.b16 %v2604
    %v2740 = vunpack.c.l.b16 %v2605
    %v2741 = vunpack.c.l.b16 %v2606
    %v2742 = vunpack.c.l.b16 %v2607
    %v2743 = vunpack.c.l.b16 %v2608
    %v2744 = vunpack.c.l.b16 %v2609
    %v2745 = vunpack.c.l.b16 %v2610
    %v2746 = vunpack.c.l.b16 %v2611
    %v2747 = vunpack.c.l.b16 %v2612
    %v2748 = vunpack.c.l.b16 %v2613
    %v2749 = vunpack.c.l.b16 %v2614
    %v2750 = vunpack.c.l.b16 %v2615
    %v2751 = vunpack.c.l.b16 %v2616
    %v2752 = vunpack.c.l.b16 %v2617
    %v2753 = vunpack.c.l.b16 %v2618
    %v2754 = vunpack.c.l.b16 %v2619
    %v2755 = vunpack.c.l.b16 %v2620
    %v2756 = vunpack.c.l.b16 %v2621
    %v2757 = vunpack.c.l.b16 %v2622
    %v2758 = vunpack.c.l.b16 %v2623
    %v2759 = vunpack.c.l.b16 %v2624
    %v2760 = vunpack.c.l.b16 %v2625
    %v2761 = vunpack.c.l.b16 %v2626
    %v2762 = vunpack.c.l.b16 %v2627
    %v2763 = vunpack.c.l.b16 %v2628
    %v2764 = vunpack.c.l.b16 %v2629
    %v2765 = vunpack.c.l.b16 %v2630
    %v2766 = vunpack.c.l.b16 %v2631
    %v2767 = vunpack.c.l.b16 %v2632
    %v2768 = vunpack.c.l.b16 %v2633
    %v2769 = vunpack.c.l.b16 %v2634
    %v2770 = vunpack.c.l.b16 %v2635
    %v2771 = vunpack.c.l.b16 %v2636
    %v2772 = vunpack.c.l.b16 %v2637
    %v2773 = vunpack.c.l.b16 %v2638
    %v2774 = vunpack.c.l.b16 %v2639
    %v2775 = vunpack.c.l.b16 %v2640
    %v2776 = vunpack.c.l.b16 %v2641
    %v2777 = vunpack.c.l.b16 %v2642
    %v2778 = vunpack.c.l.b16 %v2643
    %v2779 = vunpack.c.l.b16 %v2644
    %v2780 = vunpack.c.l.b16 %v2645
    %v2781 = vunpack.c.l.b16 %v2646
    %v2782 = vunpack.c.l.b16 %v2647
    %v2783 = vpack.c.b16 %v2720, %v2719
    %v2784 = vpack.c.b16 %v2722, %v2721
    %v2785 = vpack.c.b16 %v2724, %v2723
    %v2786 = vpack.c.b16 %v2726, %v2725
    %v2787 = vpack.c.b16 %v2728, %v2727
    %v2788 = vpack.c.b16 %v2730, %v2729
    %v2789 = vpack.c.b16 %v2732, %v2731
    %v2790 = vpack.c.b16 %v2734, %v2733
    %v2791 = vpack.c.b16 %v2736, %v2735
    %v2792 = vpack.c.b16 %v2738, %v2737
    %v2793 = vpack.c.b16 %v2740, %v2739
    %v2794 = vpack.c.b16 %v2742, %v2741
    %v2795 = vpack.c.b16 %v2744, %v2743
    %v2796 = vpack.c.b16 %v2746, %v2745
    %v2797 = vpack.c.b16 %v2748, %v2747
    %v2798 = vpack.c.b16 %v2750, %v2749
    %v2799 = vpack.c.b16 %v2752, %v2751
    %v2800 = vpack.c.b16 %v2754, %v2753
    %v2801 = vpack.c.b16 %v2756, %v2755
    %v2802 = vpack.c.b16 %v2758, %v2757
    %v2803 = vpack.c.b16 %v2760, %v2759
    %v2804 = vpack.c.b16 %v2762, %v2761
    %v2805 = vpack.c.b16 %v2764, %v2763
    %v2806 = vpack.c.b16 %v2766, %v2765
    %v2807 = vpack.c.b16 %v2768, %v2767
    %v2808 = vpack.c.b16 %v2770, %v2769
    %v2809 = vpack.c.b16 %v2772, %v2771
    %v2810 = vpack.c.b16 %v2774, %v2773
    %v2811 = vpack.c.b16 %v2776, %v2775
    %v2812 = vpack.c.b16 %v2778, %v2777
    %v2813 = vpack.c.b16 %v2780, %v2779
    %v2814 = vpack.c.b16 %v2782, %v2781
    %2847 = vmatprep.subr.bf16.mxu0 0
    %2848 = vmatpush1.bf16.msra.mxu0 %v2783
    %2849 = vmatprep.subr.bf16.mxu0 0
    %2850 = vmatpush1.bf16.msra.mxu0 %v2784
    %2851 = vmatprep.subr.bf16.mxu0 0
    %2852 = vmatpush1.bf16.msra.mxu0 %v2785
    %2853 = vmatprep.subr.bf16.mxu0 0
    %2854 = vmatpush1.bf16.msra.mxu0 %v2786
    %2855 = vmatprep.subr.bf16.mxu0 0
    %2856 = vmatpush1.bf16.msra.mxu0 %v2787
    %2857 = vmatprep.subr.bf16.mxu0 0
    %2858 = vmatpush1.bf16.msra.mxu0 %v2788
    %2859 = vmatprep.subr.bf16.mxu0 0
    %2860 = vmatpush1.bf16.msra.mxu0 %v2789
    %2861 = vmatprep.subr.bf16.mxu0 0
    %2862 = vmatpush1.bf16.msra.mxu0 %v2790
    %2863 = vmatprep.subr.bf16.mxu0 0
    %2864 = vmatpush1.bf16.msra.mxu0 %v2791
    %2865 = vmatprep.subr.bf16.mxu0 0
    %2866 = vmatpush1.bf16.msra.mxu0 %v2792
    %2867 = vmatprep.subr.bf16.mxu0 0
    %2868 = vmatpush1.bf16.msra.mxu0 %v2793
    %2869 = vmatprep.subr.bf16.mxu0 0
    %2870 = vmatpush1.bf16.msra.mxu0 %v2794
    %2871 = vmatprep.subr.bf16.mxu0 0
    %2872 = vmatpush1.bf16.msra.mxu0 %v2795
    %2873 = vmatprep.subr.bf16.mxu0 0
    %2874 = vmatpush1.bf16.msra.mxu0 %v2796
    %2875 = vmatprep.subr.bf16.mxu0 0
    %2876 = vmatpush1.bf16.msra.mxu0 %v2797
    %2877 = vmatprep.subr.bf16.mxu0 0
    %2878 = vmatpush1.bf16.msra.mxu0 %v2798
    %2879 = vmatprep.mubr.bf16.mxu0 %v2581
    %2880 = vmatmul.mubr.bf16.gmra.mrb[0].mxu0 %v2580
    %v2881 = vpop.f32.mrb[0].mxu0
    %v2882 = vadd.f32 %v2653, %v2881
    %v2883 = vpop.f32.mrb[0].mxu0
    %v2884 = vpop.f32.mrb[0].mxu0
    %v2885 = vpop.f32.mrb[0].mxu0
    %2886 = vdwg.mxu0
    %2887 = vmatprep.subr.bf16.mxu0 0
    %2888 = vmatpush1.bf16.msra.mxu0 %v2799
    %2889 = vmatprep.subr.bf16.mxu0 0
    %2890 = vmatpush1.bf16.msra.mxu0 %v2800
    %2891 = vmatprep.subr.bf16.mxu0 0
    %2892 = vmatpush1.bf16.msra.mxu0 %v2801
    %2893 = vmatprep.subr.bf16.mxu0 0
    %2894 = vmatpush1.bf16.msra.mxu0 %v2802
    %2895 = vmatprep.subr.bf16.mxu0 0
    %2896 = vmatpush1.bf16.msra.mxu0 %v2803
    %2897 = vmatprep.subr.bf16.mxu0 0
    %2898 = vmatpush1.bf16.msra.mxu0 %v2804
    %2899 = vmatprep.subr.bf16.mxu0 0
    %2900 = vmatpush1.bf16.msra.mxu0 %v2805
    %2901 = vmatprep.subr.bf16.mxu0 0
    %2902 = vmatpush1.bf16.msra.mxu0 %v2806
    %2903 = vmatprep.subr.bf16.mxu0 0
    %2904 = vmatpush1.bf16.msra.mxu0 %v2807
    %2905 = vmatprep.subr.bf16.mxu0 0
    %2906 = vmatpush1.bf16.msra.mxu0 %v2808
    %2907 = vmatprep.subr.bf16.mxu0 0
    %2908 = vmatpush1.bf16.msra.mxu0 %v2809
    %2909 = vmatprep.subr.bf16.mxu0 0
    %2910 = vmatpush1.bf16.msra.mxu0 %v2810
    %2911 = vmatprep.subr.bf16.mxu0 0
    %2912 = vmatpush1.bf16.msra.mxu0 %v2811
    %2913 = vmatprep.subr.bf16.mxu0 0
    %2914 = vmatpush1.bf16.msra.mxu0 %v2812
    %2915 = vmatprep.subr.bf16.mxu0 0
    %2916 = vmatpush1.bf16.msra.mxu0 %v2813
    %2917 = vmatprep.subr.bf16.mxu0 0
    %2918 = vmatpush1.bf16.msra.mxu0 %v2814
    %2919 = vmatprep.mubr.bf16.mxu0 %v2583
    %2920 = vmatmul.mubr.bf16.gmra.mrb[0].mxu0 %v2582
    %v2921 = vpop.f32.mrb[0].mxu0
    %v2922 = vadd.f32 %v2882, %v2921
    %v2923 = vpop.f32.mrb[0].mxu0
    %v2924 = vpop.f32.mrb[0].mxu0
    %v2925 = vpop.f32.mrb[0].mxu0
    %2926 = vdwg.mxu0
    %2927 = vst [vmem:[#allocation7] sm:$0xff] %v2922
    // Predicated region
    $region38: #{neural_network_forward.1} parent=1 // pred_check
      _
    $region39: #{neural_network_forward.1} parent=1 // pred_check_branch
      %2929 = sbr.rel (0) target = $region41
    $region40: #{neural_network_forward.1} parent=1 // pred_region
      %s2931 = ssub.s32 128, 128
      %2932 = vsyncadd [#allocation4], %s2931
      %s2934 = sshll.u32 [#allocation7], 4
      %s2935 = int_to_ptr.vmem [resolvable:$true] %s2934
      %2937 = dma.vmem_to_hbm [thread:$0]  %s2935, 128, %s7, [#allocation4]
    $region41: #{neural_network_forward.1} parent=1 // pred_fallthru
      _
    // Predicated region
    $region42: #{neural_network_forward.1} parent=1 // pred_check
      _
    $region43: #{neural_network_forward.1} parent=1 // pred_check_branch
      %2939 = sbr.rel (0) target = $region45
    $region44: #{neural_network_forward.1} parent=1 // pred_region
      %2940 = dma.done [#allocation4], 128
    $region45: #{neural_network_forward.1} parent=1 // pred_fallthru
      _
    %2941 = vsyncpa [#allocation3], 1
    %2942 = vsyncpa [#allocation6], 1
    %2943 = vsyncpa [#allocation4], 1

</llo_original>
